<compile_context>
chip_gen: v6e
topology: v6e:2x2x1
jax: 0.10.0
libtpu: 0.0.40
codegen_flags: <defaults>
</compile_context>

<pallas_src>
import functools

import jax
import jax.numpy as jnp
from jax.experimental import pallas as pl
from jax.experimental.pallas import tpu as pltpu


def _round_up(x, m):
    return (x + m - 1) // m * m


def _choose_tiles(B, T, D, H, *, max_batch_tile=128, vmem_budget_bytes=24 << 20):
    """Pick (batch_tile, time_chunk) so per-chunk VMEM stays bounded."""
    TB = min(_round_up(B, 8), _round_up(max_batch_tile, 8))
    # Per-time-step VMEM cost inside a chunk:
    #   xg scratch (f32, 4H)  +  double-buffered x block (bf16, D).
    per_step = TB * (4 * H * 4 + 2 * D * 2)
    Tc = max(1, min(T, vmem_budget_bytes // per_step))
    return TB, Tc


def _lstm_chunk_kernel(x_ref, wih_ref, whh_ref, b_ref, out_ref,
                       xg_ref, h_ref, c_ref, *,
                       seq_len, chunk, batch_tile, hidden, unroll, mask_tail):
    """One (batch tile, T-chunk) grid step of the fused LSTM.

    x_ref:   (Tc, TB, D)   time-major input chunk (compute dtype, e.g. bf16)
    wih_ref: (D, 4H)       W_ih^T      (grid-invariant, single-buffered)
    whh_ref: (H, 4H)       W_hh^T      (grid-invariant, single-buffered)
    b_ref:   (1, 4H)       b_ih + b_hh (f32)
    out_ref: (TB, H)       h_T (written only on the last T-chunk)
    xg_ref:  (Tc*TB, 4H)   scratch: input projections for this chunk (f32)
    h_ref, c_ref: (TB, H)  scratch: recurrent state, carried across T-chunks
    """
    Tc, TB, H = chunk, batch_tile, hidden
    D = x_ref.shape[-1]
    t_idx = pl.program_id(1)

    # ---- Phase 1: one lane-dense MXU matmul for this chunk's input
    # projections: (Tc*TB, D) x (D, 4H) -> f32 accumulate, N = 4H lanes.
    x2d = x_ref[...].reshape(Tc * TB, D)
    xg_ref[...] = (
        jnp.dot(x2d, wih_ref[...], preferred_element_type=jnp.float32)
        + b_ref[...])

    # ---- Recurrent state: reset at the first T-chunk of each batch tile.
    @pl.when(t_idx == 0)
    def _():
        h_ref[...] = jnp.zeros_like(h_ref)
        c_ref[...] = jnp.zeros_like(c_ref)

    base_t = t_idx * Tc

    # ---- Phase 2: sequential recurrence; h/c stay in vregs within the chunk.
    def step(lt, carry):
        h, c = carry
        row = pl.multiple_of(lt * TB, 8)            # TB % 8 == 0 -> aligned
        gates = xg_ref[pl.ds(row, TB), :] + jnp.dot(
            h.astype(whh_ref.dtype), whh_ref[...],
            preferred_element_type=jnp.float32)
        # PyTorch gate order: input, forget, cell, output.
        i_g = jax.nn.sigmoid(gates[:, 0 * H:1 * H])
        f_g = jax.nn.sigmoid(gates[:, 1 * H:2 * H])
        g_g = jnp.tanh(gates[:, 2 * H:3 * H])
        o_g = jax.nn.sigmoid(gates[:, 3 * H:4 * H])
        c_new = f_g * c + i_g * g_g
        h_new = o_g * jnp.tanh(c_new)
        if mask_tail:                               # only if T was padded up
            valid = (base_t + lt) < seq_len
            h_new = jnp.where(valid, h_new, h)
            c_new = jnp.where(valid, c_new, c)
        return h_new, c_new

    h_fin, c_fin = jax.lax.fori_loop(0, Tc, step, (h_ref[...], c_ref[...]),
                                     unroll=unroll)
    h_ref[...] = h_fin
    c_ref[...] = c_fin

    # ---- Final read-out: h_T for this batch tile.
    @pl.when(t_idx == pl.num_programs(1) - 1)
    def _():
        out_ref[...] = h_fin.astype(out_ref.dtype)


def saccumulator_forward(x, params, *, max_batch_tile=128,
                         compute_dtype=jnp.bfloat16):
    """x: (B, T, dim) -> (B, dim) == LSTM(x) output at the last time step."""
    B, T, D = x.shape
    H = params["w_hh"].shape[1]
    assert D == H, "SAccumulator uses input size == hidden size == dim"

    TB, Tc = _choose_tiles(B, T, D, H, max_batch_tile=max_batch_tile)
    Bp = _round_up(B, TB)
    Tp = _round_up(T, Tc)
    mask_tail = Tp != T

    # Pad batch / time (padded rows discarded, padded trailing steps masked).
    if (Bp, Tp) != (B, T):
        x_p = jnp.zeros((Bp, Tp, D), x.dtype).at[:B, :T].set(x)
    else:
        x_p = x
    x_tbd = jnp.transpose(x_p, (1, 0, 2)).astype(compute_dtype)    # (Tp, Bp, D)

    wih_t = jnp.transpose(params["w_ih"]).astype(compute_dtype)    # (D, 4H)
    whh_t = jnp.transpose(params["w_hh"]).astype(compute_dtype)    # (H, 4H)
    bias = (params["b_ih"] + params["b_hh"]).reshape(1, 4 * H).astype(jnp.float32)

    # Partial unroll for long chunks; full unroll for short ones.
    if Tc <= 16:
        unroll = Tc
    elif Tc % 4 == 0:
        unroll = 4
    elif Tc % 2 == 0:
        unroll = 2
    else:
        unroll = 1

    itemsize = jnp.dtype(compute_dtype).itemsize
    vmem_needed = (Tc * TB * 4 * H * 4                 # xg scratch (f32)
                   + 2 * Tc * TB * D * itemsize        # double-buffered x chunk
                   + (D + H) * 4 * H * itemsize        # weights (single buffer)
                   + 4 * H * 4                         # bias
                   + 2 * TB * H * 4                    # h/c scratch
                   + 2 * TB * H * 4)                   # output block
    vmem_limit = int(min(64 << 20, max(2 * vmem_needed, 16 << 20)))

    kernel = functools.partial(
        _lstm_chunk_kernel, seq_len=T, chunk=Tc, batch_tile=TB, hidden=H,
        unroll=unroll, mask_tail=mask_tail)

    out = pl.pallas_call(
        kernel,
        out_shape=jax.ShapeDtypeStruct((Bp, H), jnp.float32),
        grid=(Bp // TB, Tp // Tc),
        in_specs=[
            pl.BlockSpec((Tc, TB, D), lambda b, t: (t, b, 0)),
            pl.BlockSpec((D, 4 * H), lambda b, t: (0, 0),
                         pipeline_mode=pl.Buffered(1)),
            pl.BlockSpec((H, 4 * H), lambda b, t: (0, 0),
                         pipeline_mode=pl.Buffered(1)),
            pl.BlockSpec((1, 4 * H), lambda b, t: (0, 0),
                         pipeline_mode=pl.Buffered(1)),
        ],
        out_specs=pl.BlockSpec((TB, H), lambda b, t: (b, 0)),
        scratch_shapes=[
            pltpu.VMEM((Tc * TB, 4 * H), jnp.float32),   # input projections
            pltpu.VMEM((TB, H), jnp.float32),            # h state (carried over T)
            pltpu.VMEM((TB, H), jnp.float32),            # c state (carried over T)
        ],
        compiler_params=pltpu.CompilerParams(
            dimension_semantics=("parallel", "arbitrary"),
            vmem_limit_bytes=vmem_limit),
    )(x_tbd, wih_t, whh_t, bias)

    return out[:B]


def init_params(key, dim=128):
    """PyTorch-style nn.LSTM parameters (gate order i, f, g, o)."""
    k = 1.0 / jnp.sqrt(jnp.float32(dim))
    ks = jax.random.split(key, 4)
    return {
        "w_ih": jax.random.uniform(ks[0], (4 * dim, dim), minval=-k, maxval=k),
        "w_hh": jax.random.uniform(ks[1], (4 * dim, dim), minval=-k, maxval=k),
        "b_ih": jax.random.uniform(ks[2], (4 * dim,), minval=-k, maxval=k),
        "b_hh": jax.random.uniform(ks[3], (4 * dim,), minval=-k, maxval=k),
    }


def reference_forward(x, params):
    """Pure-JAX f32 reference mirroring PyTorch nn.LSTM (batch_first), last step."""
    w_ih, w_hh = params["w_ih"], params["w_hh"]
    b = params["b_ih"] + params["b_hh"]
    B, T, D = x.shape
    H = w_hh.shape[1]

    def step(carry, x_t):
        h, c = carry
        gates = x_t @ w_ih.T + h @ w_hh.T + b
        i = jax.nn.sigmoid(gates[:, 0 * H:1 * H])
        f = jax.nn.sigmoid(gates[:, 1 * H:2 * H])
        g = jnp.tanh(gates[:, 2 * H:3 * H])
        o = jax.nn.sigmoid(gates[:, 3 * H:4 * H])
        c = f * c + i * g
        h = o * jnp.tanh(c)
        return (h, c), None

    h0 = jnp.zeros((B, H), jnp.float32)
    c0 = jnp.zeros((B, H), jnp.float32)
    (h_T, _), _ = jax.lax.scan(step, (h0, c0), jnp.swapaxes(x, 0, 1))
    return h_T


if __name__ == "__main__":
    B, T, dim = 2, 8, 128
    key = jax.random.PRNGKey(0)
    kx, kp = jax.random.split(key)

    x = jax.random.normal(kx, (B, T, dim), dtype=jnp.float32)
    params = init_params(kp, dim=dim)

    out = jax.block_until_ready(saccumulator_forward(x, params))
    ref = jax.block_until_ready(reference_forward(x, params))

    assert out.shape == ref.shape == (B, dim), (out.shape, ref.shape)
    # bf16 MXU operands (f32 accumulate) -> slightly looser tolerance than f32.
    assert jnp.allclose(out, ref, atol=2e-2, rtol=2e-2), (
        "mismatch vs reference", float(jnp.max(jnp.abs(out - ref))))

    print("KERNEL_OK")
</pallas_src>

<mosaic_0001>
module attributes {stable_mosaic.version = 11 : i64} {
  func.func @_lstm_chunk_kernel(%arg0: i32, %arg1: i32, %arg2: memref<8x8x128xbf16, #tpu.memory_space<vmem>>, %arg3: memref<128x512xbf16, #tpu.memory_space<vmem>>, %arg4: memref<128x512xbf16, #tpu.memory_space<vmem>>, %arg5: memref<1x512xf32, #tpu.memory_space<vmem>>, %arg6: memref<8x128xf32, #tpu.memory_space<vmem>>, %arg7: memref<64x512xf32, #tpu.memory_space<vmem>>, %arg8: memref<8x128xf32, #tpu.memory_space<vmem>>, %arg9: memref<8x128xf32, #tpu.memory_space<vmem>>) attributes {dimension_semantics = [#tpu.dimension_semantics<parallel>, #tpu.dimension_semantics<arbitrary>], iteration_bounds = array<i64: 1, 1>, scalar_prefetch = 0 : i64, scratch_operands = 3 : i64, tpu.core_type = #tpu.core_type<tc>, window_params = [{transform_indices = @transform_0, window_bounds = array<i64: 8, 8, 128>}, {pipeline_mode = #tpu.pipeline_mode<synchronous>, transform_indices = @transform_1, window_bounds = array<i64: 128, 512>}, {pipeline_mode = #tpu.pipeline_mode<synchronous>, transform_indices = @transform_2, window_bounds = array<i64: 128, 512>}, {pipeline_mode = #tpu.pipeline_mode<synchronous>, transform_indices = @transform_3, window_bounds = array<i64: 1, 512>}, {transform_indices = @transform_4, window_bounds = array<i64: 8, 128>}]} {
    %c0 = arith.constant 0 : index
    %c0_0 = arith.constant 0 : index
    %c0_1 = arith.constant 0 : index
    %0 = vector.load %arg2[%c0, %c0_0, %c0_1] : memref<8x8x128xbf16, #tpu.memory_space<vmem>>, vector<8x8x128xbf16>
    %1 = vector.shape_cast %0 : vector<8x8x128xbf16> to vector<64x128xbf16>
    %c0_2 = arith.constant 0 : index
    %c0_3 = arith.constant 0 : index
    %2 = vector.load %arg3[%c0_2, %c0_3] : memref<128x512xbf16, #tpu.memory_space<vmem>>, vector<128x512xbf16>
    %cst = arith.constant dense<0.000000e+00> : vector<64x512xf32>
    %3 = tpu.matmul %1, %2, %cst {dimension_numbers = #tpu.dot_dimension_numbers<[1], [0], [0], [1], [0, 0, 1, 1], [], []>} : vector<64x128xbf16>, vector<128x512xbf16>, vector<64x512xf32> -> vector<64x512xf32>
    %c0_4 = arith.constant 0 : index
    %c0_5 = arith.constant 0 : index
    %4 = vector.load %arg5[%c0_4, %c0_5] : memref<1x512xf32, #tpu.memory_space<vmem>>, vector<1x512xf32>
    %5 = vector.broadcast %4 : vector<1x512xf32> to vector<64x512xf32>
    %6 = arith.addf %3, %5 : vector<64x512xf32>
    %c0_6 = arith.constant 0 : index
    %c0_7 = arith.constant 0 : index
    %7 = vector.load %arg7[%c0_6, %c0_7] : memref<64x512xf32, #tpu.memory_space<vmem>>, vector<64x512xf32>
    tpu.vector_store %arg7[%c0_6, %c0_7], %6 {strides = array<i32>} : memref<64x512xf32, #tpu.memory_space<vmem>>, vector<64x512xf32>,
    %c0_i32 = arith.constant 0 : i32
    %8 = arith.cmpi eq, %arg1, %c0_i32 : i32
    %9 = arith.extui %8 : i1 to i32
    %c0_i32_8 = arith.constant 0 : i32
    %10 = arith.cmpi ne, %9, %c0_i32_8 : i32
    scf.if %10 {
      %cst_84 = arith.constant 0.000000e+00 : f32
      %282 = vector.broadcast %cst_84 : f32 to vector<8x128xf32>
      %c0_85 = arith.constant 0 : index
      %c0_86 = arith.constant 0 : index
      %283 = vector.load %arg8[%c0_85, %c0_86] : memref<8x128xf32, #tpu.memory_space<vmem>>, vector<8x128xf32>
      tpu.vector_store %arg8[%c0_85, %c0_86], %282 {strides = array<i32>} : memref<8x128xf32, #tpu.memory_space<vmem>>, vector<8x128xf32>,
      %cst_87 = arith.constant 0.000000e+00 : f32
      %284 = vector.broadcast %cst_87 : f32 to vector<8x128xf32>
      %c0_88 = arith.constant 0 : index
      %c0_89 = arith.constant 0 : index
      %285 = vector.load %arg9[%c0_88, %c0_89] : memref<8x128xf32, #tpu.memory_space<vmem>>, vector<8x128xf32>
      tpu.vector_store %arg9[%c0_88, %c0_89], %284 {strides = array<i32>} : memref<8x128xf32, #tpu.memory_space<vmem>>, vector<8x128xf32>,
    } else {
    }
    %c0_9 = arith.constant 0 : index
    %c0_10 = arith.constant 0 : index
    %11 = vector.load %arg8[%c0_9, %c0_10] : memref<8x128xf32, #tpu.memory_space<vmem>>, vector<8x128xf32>
    %c0_11 = arith.constant 0 : index
    %c0_12 = arith.constant 0 : index
    %12 = vector.load %arg9[%c0_11, %c0_12] : memref<8x128xf32, #tpu.memory_space<vmem>>, vector<8x128xf32>
    %c0_i32_13 = arith.constant 0 : i32
    %c8_i32 = arith.constant 8 : i32
    %13 = arith.muli %c0_i32_13, %c8_i32 : i32
    %14 = tpu.assume_multiple %13, 8 : i32
    %15 = arith.index_cast %14 : i32 to index
    %c0_14 = arith.constant 0 : index
    %16 = vector.load %arg7[%15, %c0_14] : memref<64x512xf32, #tpu.memory_space<vmem>>, vector<8x512xf32>
    %17 = arith.truncf %11 : vector<8x128xf32> to vector<8x128xbf16>
    %c0_15 = arith.constant 0 : index
    %c0_16 = arith.constant 0 : index
    %18 = vector.load %arg4[%c0_15, %c0_16] : memref<128x512xbf16, #tpu.memory_space<vmem>>, vector<128x512xbf16>
    %cst_17 = arith.constant dense<0.000000e+00> : vector<8x512xf32>
    %19 = tpu.matmul %17, %18, %cst_17 {dimension_numbers = #tpu.dot_dimension_numbers<[1], [0], [0], [1], [0, 0, 1, 1], [], []>} : vector<8x128xbf16>, vector<128x512xbf16>, vector<8x512xf32> -> vector<8x512xf32>
    %20 = arith.addf %16, %19 : vector<8x512xf32>
    %21 = vector.extract_strided_slice %20 {offsets = [0, 0], sizes = [8, 128], strides = [1, 1]} : vector<8x512xf32> to vector<8x128xf32>
    %22 = arith.negf %21 : vector<8x128xf32>
    %23 = math.exp %22 : vector<8x128xf32>
    %cst_18 = arith.constant 1.000000e+00 : f32
    %24 = vector.broadcast %cst_18 : f32 to vector<8x128xf32>
    %25 = arith.addf %24, %23 : vector<8x128xf32>
    %26 = arith.divf %24, %25 : vector<8x128xf32>
    %27 = vector.extract_strided_slice %20 {offsets = [0, 128], sizes = [8, 128], strides = [1, 1]} : vector<8x512xf32> to vector<8x128xf32>
    %28 = arith.negf %27 : vector<8x128xf32>
    %29 = math.exp %28 : vector<8x128xf32>
    %cst_19 = arith.constant 1.000000e+00 : f32
    %30 = vector.broadcast %cst_19 : f32 to vector<8x128xf32>
    %31 = arith.addf %30, %29 : vector<8x128xf32>
    %32 = arith.divf %30, %31 : vector<8x128xf32>
    %33 = vector.extract_strided_slice %20 {offsets = [0, 256], sizes = [8, 128], strides = [1, 1]} : vector<8x512xf32> to vector<8x128xf32>
    %34 = math.tanh %33 : vector<8x128xf32>
    %35 = vector.extract_strided_slice %20 {offsets = [0, 384], sizes = [8, 128], strides = [1, 1]} : vector<8x512xf32> to vector<8x128xf32>
    %36 = arith.negf %35 : vector<8x128xf32>
    %37 = math.exp %36 : vector<8x128xf32>
    %cst_20 = arith.constant 1.000000e+00 : f32
    %38 = vector.broadcast %cst_20 : f32 to vector<8x128xf32>
    %39 = arith.addf %38, %37 : vector<8x128xf32>
    %40 = arith.divf %38, %39 : vector<8x128xf32>
    %41 = arith.mulf %32, %12 : vector<8x128xf32>
    %42 = arith.mulf %26, %34 : vector<8x128xf32>
    %43 = arith.addf %41, %42 : vector<8x128xf32>
    %44 = math.tanh %43 : vector<8x128xf32>
    %45 = arith.mulf %40, %44 : vector<8x128xf32>
    %c1_i32 = arith.constant 1 : i32
    %c8_i32_21 = arith.constant 8 : i32
    %46 = arith.muli %c1_i32, %c8_i32_21 : i32
    %47 = tpu.assume_multiple %46, 8 : i32
    %48 = arith.index_cast %47 : i32 to index
    %c0_22 = arith.constant 0 : index
    %49 = vector.load %arg7[%48, %c0_22] : memref<64x512xf32, #tpu.memory_space<vmem>>, vector<8x512xf32>
    %50 = arith.truncf %45 : vector<8x128xf32> to vector<8x128xbf16>
    %c0_23 = arith.constant 0 : index
    %c0_24 = arith.constant 0 : index
    %51 = vector.load %arg4[%c0_23, %c0_24] : memref<128x512xbf16, #tpu.memory_space<vmem>>, vector<128x512xbf16>
    %cst_25 = arith.constant dense<0.000000e+00> : vector<8x512xf32>
    %52 = tpu.matmul %50, %51, %cst_25 {dimension_numbers = #tpu.dot_dimension_numbers<[1], [0], [0], [1], [0, 0, 1, 1], [], []>} : vector<8x128xbf16>, vector<128x512xbf16>, vector<8x512xf32> -> vector<8x512xf32>
    %53 = arith.addf %49, %52 : vector<8x512xf32>
    %54 = vector.extract_strided_slice %53 {offsets = [0, 0], sizes = [8, 128], strides = [1, 1]} : vector<8x512xf32> to vector<8x128xf32>
    %55 = arith.negf %54 : vector<8x128xf32>
    %56 = math.exp %55 : vector<8x128xf32>
    %cst_26 = arith.constant 1.000000e+00 : f32
    %57 = vector.broadcast %cst_26 : f32 to vector<8x128xf32>
    %58 = arith.addf %57, %56 : vector<8x128xf32>
    %59 = arith.divf %57, %58 : vector<8x128xf32>
    %60 = vector.extract_strided_slice %53 {offsets = [0, 128], sizes = [8, 128], strides = [1, 1]} : vector<8x512xf32> to vector<8x128xf32>
    %61 = arith.negf %60 : vector<8x128xf32>
    %62 = math.exp %61 : vector<8x128xf32>
    %cst_27 = arith.constant 1.000000e+00 : f32
    %63 = vector.broadcast %cst_27 : f32 to vector<8x128xf32>
    %64 = arith.addf %63, %62 : vector<8x128xf32>
    %65 = arith.divf %63, %64 : vector<8x128xf32>
    %66 = vector.extract_strided_slice %53 {offsets = [0, 256], sizes = [8, 128], strides = [1, 1]} : vector<8x512xf32> to vector<8x128xf32>
    %67 = math.tanh %66 : vector<8x128xf32>
    %68 = vector.extract_strided_slice %53 {offsets = [0, 384], sizes = [8, 128], strides = [1, 1]} : vector<8x512xf32> to vector<8x128xf32>
    %69 = arith.negf %68 : vector<8x128xf32>
    %70 = math.exp %69 : vector<8x128xf32>
    %cst_28 = arith.constant 1.000000e+00 : f32
    %71 = vector.broadcast %cst_28 : f32 to vector<8x128xf32>
    %72 = arith.addf %71, %70 : vector<8x128xf32>
    %73 = arith.divf %71, %72 : vector<8x128xf32>
    %74 = arith.mulf %65, %43 : vector<8x128xf32>
    %75 = arith.mulf %59, %67 : vector<8x128xf32>
    %76 = arith.addf %74, %75 : vector<8x128xf32>
    %77 = math.tanh %76 : vector<8x128xf32>
    %78 = arith.mulf %73, %77 : vector<8x128xf32>
    %c2_i32 = arith.constant 2 : i32
    %c8_i32_29 = arith.constant 8 : i32
    %79 = arith.muli %c2_i32, %c8_i32_29 : i32
    %80 = tpu.assume_multiple %79, 8 : i32
    %81 = arith.index_cast %80 : i32 to index
    %c0_30 = arith.constant 0 : index
    %82 = vector.load %arg7[%81, %c0_30] : memref<64x512xf32, #tpu.memory_space<vmem>>, vector<8x512xf32>
    %83 = arith.truncf %78 : vector<8x128xf32> to vector<8x128xbf16>
    %c0_31 = arith.constant 0 : index
    %c0_32 = arith.constant 0 : index
    %84 = vector.load %arg4[%c0_31, %c0_32] : memref<128x512xbf16, #tpu.memory_space<vmem>>, vector<128x512xbf16>
    %cst_33 = arith.constant dense<0.000000e+00> : vector<8x512xf32>
    %85 = tpu.matmul %83, %84, %cst_33 {dimension_numbers = #tpu.dot_dimension_numbers<[1], [0], [0], [1], [0, 0, 1, 1], [], []>} : vector<8x128xbf16>, vector<128x512xbf16>, vector<8x512xf32> -> vector<8x512xf32>
    %86 = arith.addf %82, %85 : vector<8x512xf32>
    %87 = vector.extract_strided_slice %86 {offsets = [0, 0], sizes = [8, 128], strides = [1, 1]} : vector<8x512xf32> to vector<8x128xf32>
    %88 = arith.negf %87 : vector<8x128xf32>
    %89 = math.exp %88 : vector<8x128xf32>
    %cst_34 = arith.constant 1.000000e+00 : f32
    %90 = vector.broadcast %cst_34 : f32 to vector<8x128xf32>
    %91 = arith.addf %90, %89 : vector<8x128xf32>
    %92 = arith.divf %90, %91 : vector<8x128xf32>
    %93 = vector.extract_strided_slice %86 {offsets = [0, 128], sizes = [8, 128], strides = [1, 1]} : vector<8x512xf32> to vector<8x128xf32>
    %94 = arith.negf %93 : vector<8x128xf32>
    %95 = math.exp %94 : vector<8x128xf32>
    %cst_35 = arith.constant 1.000000e+00 : f32
    %96 = vector.broadcast %cst_35 : f32 to vector<8x128xf32>
    %97 = arith.addf %96, %95 : vector<8x128xf32>
    %98 = arith.divf %96, %97 : vector<8x128xf32>
    %99 = vector.extract_strided_slice %86 {offsets = [0, 256], sizes = [8, 128], strides = [1, 1]} : vector<8x512xf32> to vector<8x128xf32>
    %100 = math.tanh %99 : vector<8x128xf32>
    %101 = vector.extract_strided_slice %86 {offsets = [0, 384], sizes = [8, 128], strides = [1, 1]} : vector<8x512xf32> to vector<8x128xf32>
    %102 = arith.negf %101 : vector<8x128xf32>
    %103 = math.exp %102 : vector<8x128xf32>
    %cst_36 = arith.constant 1.000000e+00 : f32
    %104 = vector.broadcast %cst_36 : f32 to vector<8x128xf32>
    %105 = arith.addf %104, %103 : vector<8x128xf32>
    %106 = arith.divf %104, %105 : vector<8x128xf32>
    %107 = arith.mulf %98, %76 : vector<8x128xf32>
    %108 = arith.mulf %92, %100 : vector<8x128xf32>
    %109 = arith.addf %107, %108 : vector<8x128xf32>
    %110 = math.tanh %109 : vector<8x128xf32>
    %111 = arith.mulf %106, %110 : vector<8x128xf32>
    %c3_i32 = arith.constant 3 : i32
    %c8_i32_37 = arith.constant 8 : i32
    %112 = arith.muli %c3_i32, %c8_i32_37 : i32
    %113 = tpu.assume_multiple %112, 8 : i32
    %114 = arith.index_cast %113 : i32 to index
    %c0_38 = arith.constant 0 : index
    %115 = vector.load %arg7[%114, %c0_38] : memref<64x512xf32, #tpu.memory_space<vmem>>, vector<8x512xf32>
    %116 = arith.truncf %111 : vector<8x128xf32> to vector<8x128xbf16>
    %c0_39 = arith.constant 0 : index
    %c0_40 = arith.constant 0 : index
    %117 = vector.load %arg4[%c0_39, %c0_40] : memref<128x512xbf16, #tpu.memory_space<vmem>>, vector<128x512xbf16>
    %cst_41 = arith.constant dense<0.000000e+00> : vector<8x512xf32>
    %118 = tpu.matmul %116, %117, %cst_41 {dimension_numbers = #tpu.dot_dimension_numbers<[1], [0], [0], [1], [0, 0, 1, 1], [], []>} : vector<8x128xbf16>, vector<128x512xbf16>, vector<8x512xf32> -> vector<8x512xf32>
    %119 = arith.addf %115, %118 : vector<8x512xf32>
    %120 = vector.extract_strided_slice %119 {offsets = [0, 0], sizes = [8, 128], strides = [1, 1]} : vector<8x512xf32> to vector<8x128xf32>
    %121 = arith.negf %120 : vector<8x128xf32>
    %122 = math.exp %121 : vector<8x128xf32>
    %cst_42 = arith.constant 1.000000e+00 : f32
    %123 = vector.broadcast %cst_42 : f32 to vector<8x128xf32>
    %124 = arith.addf %123, %122 : vector<8x128xf32>
    %125 = arith.divf %123, %124 : vector<8x128xf32>
    %126 = vector.extract_strided_slice %119 {offsets = [0, 128], sizes = [8, 128], strides = [1, 1]} : vector<8x512xf32> to vector<8x128xf32>
    %127 = arith.negf %126 : vector<8x128xf32>
    %128 = math.exp %127 : vector<8x128xf32>
    %cst_43 = arith.constant 1.000000e+00 : f32
    %129 = vector.broadcast %cst_43 : f32 to vector<8x128xf32>
    %130 = arith.addf %129, %128 : vector<8x128xf32>
    %131 = arith.divf %129, %130 : vector<8x128xf32>
    %132 = vector.extract_strided_slice %119 {offsets = [0, 256], sizes = [8, 128], strides = [1, 1]} : vector<8x512xf32> to vector<8x128xf32>
    %133 = math.tanh %132 : vector<8x128xf32>
    %134 = vector.extract_strided_slice %119 {offsets = [0, 384], sizes = [8, 128], strides = [1, 1]} : vector<8x512xf32> to vector<8x128xf32>
    %135 = arith.negf %134 : vector<8x128xf32>
    %136 = math.exp %135 : vector<8x128xf32>
    %cst_44 = arith.constant 1.000000e+00 : f32
    %137 = vector.broadcast %cst_44 : f32 to vector<8x128xf32>
    %138 = arith.addf %137, %136 : vector<8x128xf32>
    %139 = arith.divf %137, %138 : vector<8x128xf32>
    %140 = arith.mulf %131, %109 : vector<8x128xf32>
    %141 = arith.mulf %125, %133 : vector<8x128xf32>
    %142 = arith.addf %140, %141 : vector<8x128xf32>
    %143 = math.tanh %142 : vector<8x128xf32>
    %144 = arith.mulf %139, %143 : vector<8x128xf32>
    %c4_i32 = arith.constant 4 : i32
    %c8_i32_45 = arith.constant 8 : i32
    %145 = arith.muli %c4_i32, %c8_i32_45 : i32
    %146 = tpu.assume_multiple %145, 8 : i32
    %147 = arith.index_cast %146 : i32 to index
    %c0_46 = arith.constant 0 : index
    %148 = vector.load %arg7[%147, %c0_46] : memref<64x512xf32, #tpu.memory_space<vmem>>, vector<8x512xf32>
    %149 = arith.truncf %144 : vector<8x128xf32> to vector<8x128xbf16>
    %c0_47 = arith.constant 0 : index
    %c0_48 = arith.constant 0 : index
    %150 = vector.load %arg4[%c0_47, %c0_48] : memref<128x512xbf16, #tpu.memory_space<vmem>>, vector<128x512xbf16>
    %cst_49 = arith.constant dense<0.000000e+00> : vector<8x512xf32>
    %151 = tpu.matmul %149, %150, %cst_49 {dimension_numbers = #tpu.dot_dimension_numbers<[1], [0], [0], [1], [0, 0, 1, 1], [], []>} : vector<8x128xbf16>, vector<128x512xbf16>, vector<8x512xf32> -> vector<8x512xf32>
    %152 = arith.addf %148, %151 : vector<8x512xf32>
    %153 = vector.extract_strided_slice %152 {offsets = [0, 0], sizes = [8, 128], strides = [1, 1]} : vector<8x512xf32> to vector<8x128xf32>
    %154 = arith.negf %153 : vector<8x128xf32>
    %155 = math.exp %154 : vector<8x128xf32>
    %cst_50 = arith.constant 1.000000e+00 : f32
    %156 = vector.broadcast %cst_50 : f32 to vector<8x128xf32>
    %157 = arith.addf %156, %155 : vector<8x128xf32>
    %158 = arith.divf %156, %157 : vector<8x128xf32>
    %159 = vector.extract_strided_slice %152 {offsets = [0, 128], sizes = [8, 128], strides = [1, 1]} : vector<8x512xf32> to vector<8x128xf32>
    %160 = arith.negf %159 : vector<8x128xf32>
    %161 = math.exp %160 : vector<8x128xf32>
    %cst_51 = arith.constant 1.000000e+00 : f32
    %162 = vector.broadcast %cst_51 : f32 to vector<8x128xf32>
    %163 = arith.addf %162, %161 : vector<8x128xf32>
    %164 = arith.divf %162, %163 : vector<8x128xf32>
    %165 = vector.extract_strided_slice %152 {offsets = [0, 256], sizes = [8, 128], strides = [1, 1]} : vector<8x512xf32> to vector<8x128xf32>
    %166 = math.tanh %165 : vector<8x128xf32>
    %167 = vector.extract_strided_slice %152 {offsets = [0, 384], sizes = [8, 128], strides = [1, 1]} : vector<8x512xf32> to vector<8x128xf32>
    %168 = arith.negf %167 : vector<8x128xf32>
    %169 = math.exp %168 : vector<8x128xf32>
    %cst_52 = arith.constant 1.000000e+00 : f32
    %170 = vector.broadcast %cst_52 : f32 to vector<8x128xf32>
    %171 = arith.addf %170, %169 : vector<8x128xf32>
    %172 = arith.divf %170, %171 : vector<8x128xf32>
    %173 = arith.mulf %164, %142 : vector<8x128xf32>
    %174 = arith.mulf %158, %166 : vector<8x128xf32>
    %175 = arith.addf %173, %174 : vector<8x128xf32>
    %176 = math.tanh %175 : vector<8x128xf32>
    %177 = arith.mulf %172, %176 : vector<8x128xf32>
    %c5_i32 = arith.constant 5 : i32
    %c8_i32_53 = arith.constant 8 : i32
    %178 = arith.muli %c5_i32, %c8_i32_53 : i32
    %179 = tpu.assume_multiple %178, 8 : i32
    %180 = arith.index_cast %179 : i32 to index
    %c0_54 = arith.constant 0 : index
    %181 = vector.load %arg7[%180, %c0_54] : memref<64x512xf32, #tpu.memory_space<vmem>>, vector<8x512xf32>
    %182 = arith.truncf %177 : vector<8x128xf32> to vector<8x128xbf16>
    %c0_55 = arith.constant 0 : index
    %c0_56 = arith.constant 0 : index
    %183 = vector.load %arg4[%c0_55, %c0_56] : memref<128x512xbf16, #tpu.memory_space<vmem>>, vector<128x512xbf16>
    %cst_57 = arith.constant dense<0.000000e+00> : vector<8x512xf32>
    %184 = tpu.matmul %182, %183, %cst_57 {dimension_numbers = #tpu.dot_dimension_numbers<[1], [0], [0], [1], [0, 0, 1, 1], [], []>} : vector<8x128xbf16>, vector<128x512xbf16>, vector<8x512xf32> -> vector<8x512xf32>
    %185 = arith.addf %181, %184 : vector<8x512xf32>
    %186 = vector.extract_strided_slice %185 {offsets = [0, 0], sizes = [8, 128], strides = [1, 1]} : vector<8x512xf32> to vector<8x128xf32>
    %187 = arith.negf %186 : vector<8x128xf32>
    %188 = math.exp %187 : vector<8x128xf32>
    %cst_58 = arith.constant 1.000000e+00 : f32
    %189 = vector.broadcast %cst_58 : f32 to vector<8x128xf32>
    %190 = arith.addf %189, %188 : vector<8x128xf32>
    %191 = arith.divf %189, %190 : vector<8x128xf32>
    %192 = vector.extract_strided_slice %185 {offsets = [0, 128], sizes = [8, 128], strides = [1, 1]} : vector<8x512xf32> to vector<8x128xf32>
    %193 = arith.negf %192 : vector<8x128xf32>
    %194 = math.exp %193 : vector<8x128xf32>
    %cst_59 = arith.constant 1.000000e+00 : f32
    %195 = vector.broadcast %cst_59 : f32 to vector<8x128xf32>
    %196 = arith.addf %195, %194 : vector<8x128xf32>
    %197 = arith.divf %195, %196 : vector<8x128xf32>
    %198 = vector.extract_strided_slice %185 {offsets = [0, 256], sizes = [8, 128], strides = [1, 1]} : vector<8x512xf32> to vector<8x128xf32>
    %199 = math.tanh %198 : vector<8x128xf32>
    %200 = vector.extract_strided_slice %185 {offsets = [0, 384], sizes = [8, 128], strides = [1, 1]} : vector<8x512xf32> to vector<8x128xf32>
    %201 = arith.negf %200 : vector<8x128xf32>
    %202 = math.exp %201 : vector<8x128xf32>
    %cst_60 = arith.constant 1.000000e+00 : f32
    %203 = vector.broadcast %cst_60 : f32 to vector<8x128xf32>
    %204 = arith.addf %203, %202 : vector<8x128xf32>
    %205 = arith.divf %203, %204 : vector<8x128xf32>
    %206 = arith.mulf %197, %175 : vector<8x128xf32>
    %207 = arith.mulf %191, %199 : vector<8x128xf32>
    %208 = arith.addf %206, %207 : vector<8x128xf32>
    %209 = math.tanh %208 : vector<8x128xf32>
    %210 = arith.mulf %205, %209 : vector<8x128xf32>
    %c6_i32 = arith.constant 6 : i32
    %c8_i32_61 = arith.constant 8 : i32
    %211 = arith.muli %c6_i32, %c8_i32_61 : i32
    %212 = tpu.assume_multiple %211, 8 : i32
    %213 = arith.index_cast %212 : i32 to index
    %c0_62 = arith.constant 0 : index
    %214 = vector.load %arg7[%213, %c0_62] : memref<64x512xf32, #tpu.memory_space<vmem>>, vector<8x512xf32>
    %215 = arith.truncf %210 : vector<8x128xf32> to vector<8x128xbf16>
    %c0_63 = arith.constant 0 : index
    %c0_64 = arith.constant 0 : index
    %216 = vector.load %arg4[%c0_63, %c0_64] : memref<128x512xbf16, #tpu.memory_space<vmem>>, vector<128x512xbf16>
    %cst_65 = arith.constant dense<0.000000e+00> : vector<8x512xf32>
    %217 = tpu.matmul %215, %216, %cst_65 {dimension_numbers = #tpu.dot_dimension_numbers<[1], [0], [0], [1], [0, 0, 1, 1], [], []>} : vector<8x128xbf16>, vector<128x512xbf16>, vector<8x512xf32> -> vector<8x512xf32>
    %218 = arith.addf %214, %217 : vector<8x512xf32>
    %219 = vector.extract_strided_slice %218 {offsets = [0, 0], sizes = [8, 128], strides = [1, 1]} : vector<8x512xf32> to vector<8x128xf32>
    %220 = arith.negf %219 : vector<8x128xf32>
    %221 = math.exp %220 : vector<8x128xf32>
    %cst_66 = arith.constant 1.000000e+00 : f32
    %222 = vector.broadcast %cst_66 : f32 to vector<8x128xf32>
    %223 = arith.addf %222, %221 : vector<8x128xf32>
    %224 = arith.divf %222, %223 : vector<8x128xf32>
    %225 = vector.extract_strided_slice %218 {offsets = [0, 128], sizes = [8, 128], strides = [1, 1]} : vector<8x512xf32> to vector<8x128xf32>
    %226 = arith.negf %225 : vector<8x128xf32>
    %227 = math.exp %226 : vector<8x128xf32>
    %cst_67 = arith.constant 1.000000e+00 : f32
    %228 = vector.broadcast %cst_67 : f32 to vector<8x128xf32>
    %229 = arith.addf %228, %227 : vector<8x128xf32>
    %230 = arith.divf %228, %229 : vector<8x128xf32>
    %231 = vector.extract_strided_slice %218 {offsets = [0, 256], sizes = [8, 128], strides = [1, 1]} : vector<8x512xf32> to vector<8x128xf32>
    %232 = math.tanh %231 : vector<8x128xf32>
    %233 = vector.extract_strided_slice %218 {offsets = [0, 384], sizes = [8, 128], strides = [1, 1]} : vector<8x512xf32> to vector<8x128xf32>
    %234 = arith.negf %233 : vector<8x128xf32>
    %235 = math.exp %234 : vector<8x128xf32>
    %cst_68 = arith.constant 1.000000e+00 : f32
    %236 = vector.broadcast %cst_68 : f32 to vector<8x128xf32>
    %237 = arith.addf %236, %235 : vector<8x128xf32>
    %238 = arith.divf %236, %237 : vector<8x128xf32>
    %239 = arith.mulf %230, %208 : vector<8x128xf32>
    %240 = arith.mulf %224, %232 : vector<8x128xf32>
    %241 = arith.addf %239, %240 : vector<8x128xf32>
    %242 = math.tanh %241 : vector<8x128xf32>
    %243 = arith.mulf %238, %242 : vector<8x128xf32>
    %c7_i32 = arith.constant 7 : i32
    %c8_i32_69 = arith.constant 8 : i32
    %244 = arith.muli %c7_i32, %c8_i32_69 : i32
    %245 = tpu.assume_multiple %244, 8 : i32
    %246 = arith.index_cast %245 : i32 to index
    %c0_70 = arith.constant 0 : index
    %247 = vector.load %arg7[%246, %c0_70] : memref<64x512xf32, #tpu.memory_space<vmem>>, vector<8x512xf32>
    %248 = arith.truncf %243 : vector<8x128xf32> to vector<8x128xbf16>
    %c0_71 = arith.constant 0 : index
    %c0_72 = arith.constant 0 : index
    %249 = vector.load %arg4[%c0_71, %c0_72] : memref<128x512xbf16, #tpu.memory_space<vmem>>, vector<128x512xbf16>
    %cst_73 = arith.constant dense<0.000000e+00> : vector<8x512xf32>
    %250 = tpu.matmul %248, %249, %cst_73 {dimension_numbers = #tpu.dot_dimension_numbers<[1], [0], [0], [1], [0, 0, 1, 1], [], []>} : vector<8x128xbf16>, vector<128x512xbf16>, vector<8x512xf32> -> vector<8x512xf32>
    %251 = arith.addf %247, %250 : vector<8x512xf32>
    %252 = vector.extract_strided_slice %251 {offsets = [0, 0], sizes = [8, 128], strides = [1, 1]} : vector<8x512xf32> to vector<8x128xf32>
    %253 = arith.negf %252 : vector<8x128xf32>
    %254 = math.exp %253 : vector<8x128xf32>
    %cst_74 = arith.constant 1.000000e+00 : f32
    %255 = vector.broadcast %cst_74 : f32 to vector<8x128xf32>
    %256 = arith.addf %255, %254 : vector<8x128xf32>
    %257 = arith.divf %255, %256 : vector<8x128xf32>
    %258 = vector.extract_strided_slice %251 {offsets = [0, 128], sizes = [8, 128], strides = [1, 1]} : vector<8x512xf32> to vector<8x128xf32>
    %259 = arith.negf %258 : vector<8x128xf32>
    %260 = math.exp %259 : vector<8x128xf32>
    %cst_75 = arith.constant 1.000000e+00 : f32
    %261 = vector.broadcast %cst_75 : f32 to vector<8x128xf32>
    %262 = arith.addf %261, %260 : vector<8x128xf32>
    %263 = arith.divf %261, %262 : vector<8x128xf32>
    %264 = vector.extract_strided_slice %251 {offsets = [0, 256], sizes = [8, 128], strides = [1, 1]} : vector<8x512xf32> to vector<8x128xf32>
    %265 = math.tanh %264 : vector<8x128xf32>
    %266 = vector.extract_strided_slice %251 {offsets = [0, 384], sizes = [8, 128], strides = [1, 1]} : vector<8x512xf32> to vector<8x128xf32>
    %267 = arith.negf %266 : vector<8x128xf32>
    %268 = math.exp %267 : vector<8x128xf32>
    %cst_76 = arith.constant 1.000000e+00 : f32
    %269 = vector.broadcast %cst_76 : f32 to vector<8x128xf32>
    %270 = arith.addf %269, %268 : vector<8x128xf32>
    %271 = arith.divf %269, %270 : vector<8x128xf32>
    %272 = arith.mulf %263, %241 : vector<8x128xf32>
    %273 = arith.mulf %257, %265 : vector<8x128xf32>
    %274 = arith.addf %272, %273 : vector<8x128xf32>
    %275 = math.tanh %274 : vector<8x128xf32>
    %276 = arith.mulf %271, %275 : vector<8x128xf32>
    %c8_i32_77 = arith.constant 8 : i32
    %c0_78 = arith.constant 0 : index
    %c0_79 = arith.constant 0 : index
    %277 = vector.load %arg8[%c0_78, %c0_79] : memref<8x128xf32, #tpu.memory_space<vmem>>, vector<8x128xf32>
    tpu.vector_store %arg8[%c0_78, %c0_79], %276 {strides = array<i32>} : memref<8x128xf32, #tpu.memory_space<vmem>>, vector<8x128xf32>,
    %c0_80 = arith.constant 0 : index
    %c0_81 = arith.constant 0 : index
    %278 = vector.load %arg9[%c0_80, %c0_81] : memref<8x128xf32, #tpu.memory_space<vmem>>, vector<8x128xf32>
    tpu.vector_store %arg9[%c0_80, %c0_81], %274 {strides = array<i32>} : memref<8x128xf32, #tpu.memory_space<vmem>>, vector<8x128xf32>,
    %c0_i32_82 = arith.constant 0 : i32
    %279 = arith.cmpi eq, %arg1, %c0_i32_82 : i32
    %280 = arith.extui %279 : i1 to i32
    %c0_i32_83 = arith.constant 0 : i32
    %281 = arith.cmpi ne, %280, %c0_i32_83 : i32
    scf.if %281 {
      %c0_84 = arith.constant 0 : index
      %c0_85 = arith.constant 0 : index
      %282 = vector.load %arg6[%c0_84, %c0_85] : memref<8x128xf32, #tpu.memory_space<vmem>>, vector<8x128xf32>
      tpu.vector_store %arg6[%c0_84, %c0_85], %276 {strides = array<i32>} : memref<8x128xf32, #tpu.memory_space<vmem>>, vector<8x128xf32>,
    } else {
    }
    return
  }
  func.func @transform_0(%arg0: i32, %arg1: i32) -> (i32, i32, i32) {
    %c0_i32 = arith.constant 0 : i32
    %c0_i32_0 = arith.constant 0 : i32
    return %arg1, %arg0, %c0_i32 : i32, i32, i32
  }
  func.func @transform_1(%arg0: i32, %arg1: i32) -> (i32, i32) {
    %c0_i32 = arith.constant 0 : i32
    %c0_i32_0 = arith.constant 0 : i32
    %c0_i32_1 = arith.constant 0 : i32
    return %c0_i32, %c0_i32_0 : i32, i32
  }
  func.func @transform_2(%arg0: i32, %arg1: i32) -> (i32, i32) {
    %c0_i32 = arith.constant 0 : i32
    %c0_i32_0 = arith.constant 0 : i32
    %c0_i32_1 = arith.constant 0 : i32
    return %c0_i32, %c0_i32_0 : i32, i32
  }
  func.func @transform_3(%arg0: i32, %arg1: i32) -> (i32, i32) {
    %c0_i32 = arith.constant 0 : i32
    %c0_i32_0 = arith.constant 0 : i32
    %c0_i32_1 = arith.constant 0 : i32
    return %c0_i32, %c0_i32_0 : i32, i32
  }
  func.func @transform_4(%arg0: i32, %arg1: i32) -> (i32, i32) {
    %c0_i32 = arith.constant 0 : i32
    %c0_i32_0 = arith.constant 0 : i32
    return %arg0, %c0_i32 : i32, i32
  }
}

</mosaic_0001>

<llo_original>
// kernel: tpu_custom_call.1
$region0: #{tpu_custom_call.1}
  #allocation0 [shape = 'u32[]', space=smem, size = 0x4, offset = 0x4, fixed_abs, tag = 'smem constant byte address 0x4 - core index']
  #allocation1 [shape = 'u32[144,128]{1,0:T(1,128)}', space=vmem, size = 0x12000, scoped, tag = 'internal scratch']
  #allocation2 [shape = 'f32[64,512]{1,0:T(8,128)}', space=vmem, size = 0x20000, scoped, tag = 'scratch operand']
  #allocation3 [shape = 'f32[8,128]{1,0:T(8,128)}', space=vmem, size = 0x1000, scoped, tag = 'scratch operand']
  #allocation4 [shape = 'f32[8,128]{1,0:T(8,128)}', space=vmem, size = 0x1000, scoped, tag = 'scratch operand']
  %s0 = inlined_call_operand.hbm [shape: bf16[8,8,128], index: 0, kind: input, shape index: {}]
  %s1 = inlined_call_operand.hbm [shape: bf16[128,512], index: 1, kind: input, shape index: {}]
  %s2 = inlined_call_operand.hbm [shape: bf16[128,512], index: 2, kind: input, shape index: {}]
  %s3 = inlined_call_operand.vmem [shape: f32[1,512], index: 3, kind: input, shape index: {}]
  %s4 = inlined_call_operand.hbm [shape: f32[8,128], index: 4, kind: output, shape index: {}]
  %s5 = sld [smem:[#allocation0]]
  $region46: #{tpu_custom_call.1} parent=0
    _
  %s7 = ssub.s32 1, %s5
  %s8 = scalar_select 0, %s7, %s5
  $region1: #{tpu_custom_call.1} parent=0
    #allocation5 [shape = 'u8[16384]{0}', space=vmem, size = 0x4000, scoped, tag = 'input window, operand 0, single buffered']
    #allocation6 [shape = 's32[1]{0}', space=sflag, size = 0x4, scoped, tag = 'scoped memory for tpu_custom_call.1']
    #allocation7 [shape = 's32[1]{0}', space=sflag, size = 0x4, scoped, tag = 'scoped memory for tpu_custom_call.1']
    #allocation8 [shape = 'u8[131072]{0}', space=vmem, size = 0x20000, scoped, tag = 'input window, operand 1, single buffered']
    #allocation9 [shape = 's32[1]{0}', space=sflag, size = 0x4, scoped, tag = 'scoped memory for tpu_custom_call.1']
    #allocation10 [shape = 'u8[131072]{0}', space=vmem, size = 0x20000, scoped, tag = 'input window, operand 2, single buffered']
    #allocation11 [shape = 'u8[4096]{0}', space=vmem, size = 0x1000, scoped, tag = 'output window, operand 0, single buffered']
    %9 = vsyncpa [#allocation6], 0
    %10 = vsyncpa [#allocation9], 0
    %11 = vsyncpa [#allocation7], 0
    // Predicated region
    $region2: #{tpu_custom_call.1} parent=1 // pred_check
      _
    $region3: #{tpu_custom_call.1} parent=1 // pred_check_branch
      %13 = sbr.rel (0) target = $region5
    $region4: #{tpu_custom_call.1} parent=1 // pred_region
      %s15 = ssub.s32 512, 512
      %16 = vsyncadd [#allocation6], %s15
      %s17 = sshll.u32 [#allocation5], 4
      %s18 = int_to_ptr.vmem [resolvable:$true] %s17
      %23 = dma.hbm_to_vmem [thread:$0]  %s0, 512, %s18, [#allocation6], 64, 64, 4
    $region5: #{tpu_custom_call.1} parent=1 // pred_fallthru
      _
    // Predicated region
    $region6: #{tpu_custom_call.1} parent=1 // pred_check
      _
    $region7: #{tpu_custom_call.1} parent=1 // pred_check_branch
      %25 = sbr.rel (0) target = $region9
    $region8: #{tpu_custom_call.1} parent=1 // pred_region
      %s27 = ssub.s32 4096, 4096
      %28 = vsyncadd [#allocation9], %s27
      %s29 = sshll.u32 [#allocation8], 4
      %s30 = int_to_ptr.vmem [resolvable:$true] %s29
      %35 = dma.hbm_to_vmem [thread:$0]  %s1, 4096, %s30, [#allocation9], 256, 256, 16
    $region9: #{tpu_custom_call.1} parent=1 // pred_fallthru
      _
    // Predicated region
    $region10: #{tpu_custom_call.1} parent=1 // pred_check
      _
    $region11: #{tpu_custom_call.1} parent=1 // pred_check_branch
      %37 = sbr.rel (0) target = $region13
    $region12: #{tpu_custom_call.1} parent=1 // pred_region
      %s39 = ssub.s32 4096, 4096
      %40 = vsyncadd [#allocation9], %s39
      %s41 = sshll.u32 [#allocation10], 4
      %s42 = int_to_ptr.vmem [resolvable:$true] %s41
      %47 = dma.hbm_to_vmem [thread:$0]  %s2, 4096, %s42, [#allocation9], 256, 256, 16
    $region13: #{tpu_custom_call.1} parent=1 // pred_fallthru
      _
    // Predicated region
    $region14: #{tpu_custom_call.1} parent=1 // pred_check
      _
    $region15: #{tpu_custom_call.1} parent=1 // pred_check_branch
      %49 = sbr.rel (0) target = $region17
    $region16: #{tpu_custom_call.1} parent=1 // pred_region
      _
    $region17: #{tpu_custom_call.1} parent=1 // pred_fallthru
      _
    // Predicated region
    $region18: #{tpu_custom_call.1} parent=1 // pred_check
      _
    $region19: #{tpu_custom_call.1} parent=1 // pred_check_branch
      %51 = sbr.rel (0) target = $region21
    $region20: #{tpu_custom_call.1} parent=1 // pred_region
      %52 = dma.done [#allocation6], 512
    $region21: #{tpu_custom_call.1} parent=1 // pred_fallthru
      _
    // Predicated region
    $region22: #{tpu_custom_call.1} parent=1 // pred_check
      _
    $region23: #{tpu_custom_call.1} parent=1 // pred_check_branch
      %54 = sbr.rel (0) target = $region25
    $region24: #{tpu_custom_call.1} parent=1 // pred_region
      %55 = dma.done [#allocation9], 4096
    $region25: #{tpu_custom_call.1} parent=1 // pred_fallthru
      _
    // Predicated region
    $region26: #{tpu_custom_call.1} parent=1 // pred_check
      _
    $region27: #{tpu_custom_call.1} parent=1 // pred_check_branch
      %57 = sbr.rel (0) target = $region29
    $region28: #{tpu_custom_call.1} parent=1 // pred_region
      %58 = dma.done [#allocation9], 4096
    $region29: #{tpu_custom_call.1} parent=1 // pred_fallthru
      _
    %v60 = vld [vmem:[#allocation5] sm:$0xf]
    %v61 = vld [vmem:[#allocation5 + $0x4] sm:$0xf]
    %v62 = vld [vmem:[#allocation5 + $0x8] sm:$0xf]
    %v63 = vld [vmem:[#allocation5 + $0xc] sm:$0xf]
    %v64 = vld [vmem:[#allocation5 + $0x10] sm:$0xf]
    %v65 = vld [vmem:[#allocation5 + $0x14] sm:$0xf]
    %v66 = vld [vmem:[#allocation5 + $0x18] sm:$0xf]
    %v67 = vld [vmem:[#allocation5 + $0x1c] sm:$0xf]
    %v68 = vld [vmem:[#allocation8] sm:$0xff]
    %v69 = vld [vmem:[#allocation8 + $0x8] sm:$0xff]
    %v70 = vld [vmem:[#allocation8 + $0x10] sm:$0xff]
    %v71 = vld [vmem:[#allocation8 + $0x18] sm:$0xff]
    %v72 = vld [vmem:[#allocation8 + $0x20] sm:$0xff]
    %v73 = vld [vmem:[#allocation8 + $0x28] sm:$0xff]
    %v74 = vld [vmem:[#allocation8 + $0x30] sm:$0xff]
    %v75 = vld [vmem:[#allocation8 + $0x38] sm:$0xff]
    %v76 = vld [vmem:[#allocation8 + $0x40] sm:$0xff]
    %v77 = vld [vmem:[#allocation8 + $0x48] sm:$0xff]
    %v78 = vld [vmem:[#allocation8 + $0x50] sm:$0xff]
    %v79 = vld [vmem:[#allocation8 + $0x58] sm:$0xff]
    %v80 = vld [vmem:[#allocation8 + $0x60] sm:$0xff]
    %v81 = vld [vmem:[#allocation8 + $0x68] sm:$0xff]
    %v82 = vld [vmem:[#allocation8 + $0x70] sm:$0xff]
    %v83 = vld [vmem:[#allocation8 + $0x78] sm:$0xff]
    %v84 = vld [vmem:[#allocation8 + $0x80] sm:$0xff]
    %v85 = vld [vmem:[#allocation8 + $0x88] sm:$0xff]
    %v86 = vld [vmem:[#allocation8 + $0x90] sm:$0xff]
    %v87 = vld [vmem:[#allocation8 + $0x98] sm:$0xff]
    %v88 = vld [vmem:[#allocation8 + $0xa0] sm:$0xff]
    %v89 = vld [vmem:[#allocation8 + $0xa8] sm:$0xff]
    %v90 = vld [vmem:[#allocation8 + $0xb0] sm:$0xff]
    %v91 = vld [vmem:[#allocation8 + $0xb8] sm:$0xff]
    %v92 = vld [vmem:[#allocation8 + $0xc0] sm:$0xff]
    %v93 = vld [vmem:[#allocation8 + $0xc8] sm:$0xff]
    %v94 = vld [vmem:[#allocation8 + $0xd0] sm:$0xff]
    %v95 = vld [vmem:[#allocation8 + $0xd8] sm:$0xff]
    %v96 = vld [vmem:[#allocation8 + $0xe0] sm:$0xff]
    %v97 = vld [vmem:[#allocation8 + $0xe8] sm:$0xff]
    %v98 = vld [vmem:[#allocation8 + $0xf0] sm:$0xff]
    %v99 = vld [vmem:[#allocation8 + $0xf8] sm:$0xff]
    %v100 = vld [vmem:[%s3] sm:$0xf]
    %v102 = vlaneseq
    %v103 = vshrl.u32 %v102, 7
    %v104 = vsub.s32 0, %v103
    %v105 = vrot.slane %v100, %v104
    %v106 = vlaneseq
    %v107 = vshrl.u32 %v106, 7
    %v108 = vsub.s32 1, %v107
    %v109 = vrot.slane %v100, %v108
    %v110 = vlaneseq
    %v111 = vshrl.u32 %v110, 7
    %v112 = vsub.s32 2, %v111
    %v113 = vrot.slane %v100, %v112
    %v114 = vlaneseq
    %v115 = vshrl.u32 %v114, 7
    %v116 = vsub.s32 3, %v115
    %v117 = vrot.slane %v100, %v116
    %v130 = vunpack.c.l.b16 %v60
    %v131 = vunpack.c.l.b16 %v61
    %v132 = vunpack.c.l.b16 %v62
    %v133 = vunpack.c.l.b16 %v63
    %v134 = vunpack.c.l.b16 %v64
    %v135 = vunpack.c.l.b16 %v65
    %v136 = vunpack.c.l.b16 %v66
    %v137 = vunpack.c.l.b16 %v67
    %v138 = vpack.c.b16 %v131, %v130
    %v139 = vpack.c.b16 %v133, %v132
    %v140 = vpack.c.b16 %v135, %v134
    %v141 = vpack.c.b16 %v137, %v136
    %v178 = vunpack.c.l.b16 %v68
    %v179 = vunpack.c.h.b16 %v68
    %v180 = vunpack.c.l.b16 %v69
    %v181 = vunpack.c.h.b16 %v69
    %v182 = vunpack.c.l.b16 %v70
    %v183 = vunpack.c.h.b16 %v70
    %v184 = vunpack.c.l.b16 %v71
    %v185 = vunpack.c.h.b16 %v71
    %v186 = vunpack.c.l.b16 %v72
    %v187 = vunpack.c.h.b16 %v72
    %v188 = vunpack.c.l.b16 %v73
    %v189 = vunpack.c.h.b16 %v73
    %v190 = vunpack.c.l.b16 %v74
    %v191 = vunpack.c.h.b16 %v74
    %v192 = vunpack.c.l.b16 %v75
    %v193 = vunpack.c.h.b16 %v75
    %v194 = vunpack.c.l.b16 %v76
    %v195 = vunpack.c.h.b16 %v76
    %v196 = vunpack.c.l.b16 %v77
    %v197 = vunpack.c.h.b16 %v77
    %v198 = vunpack.c.l.b16 %v78
    %v199 = vunpack.c.h.b16 %v78
    %v200 = vunpack.c.l.b16 %v79
    %v201 = vunpack.c.h.b16 %v79
    %v202 = vunpack.c.l.b16 %v80
    %v203 = vunpack.c.h.b16 %v80
    %v204 = vunpack.c.l.b16 %v81
    %v205 = vunpack.c.h.b16 %v81
    %v206 = vunpack.c.l.b16 %v82
    %v207 = vunpack.c.h.b16 %v82
    %v208 = vunpack.c.l.b16 %v83
    %v209 = vunpack.c.h.b16 %v83
    %v210 = vunpack.c.l.b16 %v84
    %v211 = vunpack.c.h.b16 %v84
    %v212 = vunpack.c.l.b16 %v85
    %v213 = vunpack.c.h.b16 %v85
    %v214 = vunpack.c.l.b16 %v86
    %v215 = vunpack.c.h.b16 %v86
    %v216 = vunpack.c.l.b16 %v87
    %v217 = vunpack.c.h.b16 %v87
    %v218 = vunpack.c.l.b16 %v88
    %v219 = vunpack.c.h.b16 %v88
    %v220 = vunpack.c.l.b16 %v89
    %v221 = vunpack.c.h.b16 %v89
    %v222 = vunpack.c.l.b16 %v90
    %v223 = vunpack.c.h.b16 %v90
    %v224 = vunpack.c.l.b16 %v91
    %v225 = vunpack.c.h.b16 %v91
    %v226 = vunpack.c.l.b16 %v92
    %v227 = vunpack.c.h.b16 %v92
    %v228 = vunpack.c.l.b16 %v93
    %v229 = vunpack.c.h.b16 %v93
    %v230 = vunpack.c.l.b16 %v94
    %v231 = vunpack.c.h.b16 %v94
    %v232 = vunpack.c.l.b16 %v95
    %v233 = vunpack.c.h.b16 %v95
    %v234 = vunpack.c.l.b16 %v96
    %v235 = vunpack.c.h.b16 %v96
    %v236 = vunpack.c.l.b16 %v97
    %v237 = vunpack.c.h.b16 %v97
    %v238 = vunpack.c.l.b16 %v98
    %v239 = vunpack.c.h.b16 %v98
    %v240 = vunpack.c.l.b16 %v99
    %v241 = vunpack.c.h.b16 %v99
    %v242 = vpack.c.b16 %v182, %v178
    %v243 = vpack.c.b16 %v183, %v179
    %v244 = vpack.c.b16 %v184, %v180
    %v245 = vpack.c.b16 %v185, %v181
    %v246 = vpack.c.b16 %v190, %v186
    %v247 = vpack.c.b16 %v191, %v187
    %v248 = vpack.c.b16 %v192, %v188
    %v249 = vpack.c.b16 %v193, %v189
    %v250 = vpack.c.b16 %v198, %v194
    %v251 = vpack.c.b16 %v199, %v195
    %v252 = vpack.c.b16 %v200, %v196
    %v253 = vpack.c.b16 %v201, %v197
    %v254 = vpack.c.b16 %v206, %v202
    %v255 = vpack.c.b16 %v207, %v203
    %v256 = vpack.c.b16 %v208, %v204
    %v257 = vpack.c.b16 %v209, %v205
    %v258 = vpack.c.b16 %v214, %v210
    %v259 = vpack.c.b16 %v215, %v211
    %v260 = vpack.c.b16 %v216, %v212
    %v261 = vpack.c.b16 %v217, %v213
    %v262 = vpack.c.b16 %v222, %v218
    %v263 = vpack.c.b16 %v223, %v219
    %v264 = vpack.c.b16 %v224, %v220
    %v265 = vpack.c.b16 %v225, %v221
    %v266 = vpack.c.b16 %v230, %v226
    %v267 = vpack.c.b16 %v231, %v227
    %v268 = vpack.c.b16 %v232, %v228
    %v269 = vpack.c.b16 %v233, %v229
    %v270 = vpack.c.b16 %v238, %v234
    %v271 = vpack.c.b16 %v239, %v235
    %v272 = vpack.c.b16 %v240, %v236
    %v273 = vpack.c.b16 %v241, %v237
    %306 = vmatprep.subr.bf16.mxu0 %v271
    %307 = vmatpush1.bf16.msra.mxu0 %v270
    %308 = vmatprep.subr.bf16.mxu0 %v267
    %309 = vmatpush1.bf16.msra.mxu0 %v266
    %310 = vmatprep.subr.bf16.mxu0 %v263
    %311 = vmatpush1.bf16.msra.mxu0 %v262
    %312 = vmatprep.subr.bf16.mxu0 %v259
    %313 = vmatpush1.bf16.msra.mxu0 %v258
    %314 = vmatprep.subr.bf16.mxu0 %v255
    %315 = vmatpush1.bf16.msra.mxu0 %v254
    %316 = vmatprep.subr.bf16.mxu0 %v251
    %317 = vmatpush1.bf16.msra.mxu0 %v250
    %318 = vmatprep.subr.bf16.mxu0 %v247
    %319 = vmatpush1.bf16.msra.mxu0 %v246
    %320 = vmatprep.subr.bf16.mxu0 %v243
    %321 = vmatpush1.bf16.msra.mxu0 %v242
    %322 = vmatprep.subr.bf16.mxu0 0
    %323 = vmatpush2.bf16.msra.mxu0 0
    %324 = vmatprep.subr.bf16.mxu0 0
    %325 = vmatpush2.bf16.msra.mxu0 0
    %326 = vmatprep.subr.bf16.mxu0 0
    %327 = vmatpush2.bf16.msra.mxu0 0
    %328 = vmatprep.subr.bf16.mxu0 0
    %329 = vmatpush2.bf16.msra.mxu0 0
    %330 = vmatprep.subr.bf16.mxu0 0
    %331 = vmatpush2.bf16.msra.mxu0 0
    %332 = vmatprep.subr.bf16.mxu0 0
    %333 = vmatpush2.bf16.msra.mxu0 0
    %334 = vmatprep.subr.bf16.mxu0 0
    %335 = vmatpush2.bf16.msra.mxu0 0
    %336 = vmatprep.subr.bf16.mxu0 0
    %337 = vmatpush2.bf16.msra.mxu0 0
    %338 = vmatprep.mubr.bf16.mxu0 0
    %339 = vmatmul.mubr.bf16.gmra.mxu0 %v138
    %v340 = vpop.f32.mrf.mxu0
    %v341 = vadd.f32 %v105, %v340
    %v342 = vpop.f32.mrf.mxu0
    %v343 = vadd.f32 %v109, %v342
    %v344 = vpop.f32.mrf.mxu0
    %v345 = vadd.f32 %v105, %v344
    %v346 = vpop.f32.mrf.mxu0
    %v347 = vadd.f32 %v109, %v346
    %348 = vmatprep.mubr.bf16.mxu0 0
    %349 = vmatmul.mubr.bf16.gmra.mxu0 %v139
    %v350 = vpop.f32.mrf.mxu0
    %v351 = vadd.f32 %v105, %v350
    %v352 = vpop.f32.mrf.mxu0
    %v353 = vadd.f32 %v109, %v352
    %v354 = vpop.f32.mrf.mxu0
    %v355 = vadd.f32 %v105, %v354
    %v356 = vpop.f32.mrf.mxu0
    %v357 = vadd.f32 %v109, %v356
    %358 = vmatprep.mubr.bf16.mxu0 0
    %359 = vmatmul.mubr.bf16.gmra.mxu0 %v140
    %v360 = vpop.f32.mrf.mxu0
    %v361 = vadd.f32 %v105, %v360
    %v362 = vpop.f32.mrf.mxu0
    %v363 = vadd.f32 %v109, %v362
    %v364 = vpop.f32.mrf.mxu0
    %v365 = vadd.f32 %v105, %v364
    %v366 = vpop.f32.mrf.mxu0
    %v367 = vadd.f32 %v109, %v366
    %368 = vmatprep.mubr.bf16.mxu0 0
    %369 = vmatmul.mubr.bf16.gmra.mxu0 %v141
    %v370 = vpop.f32.mrf.mxu0
    %v371 = vadd.f32 %v105, %v370
    %v372 = vpop.f32.mrf.mxu0
    %v373 = vadd.f32 %v109, %v372
    %v374 = vpop.f32.mrf.mxu0
    %v375 = vadd.f32 %v105, %v374
    %v376 = vpop.f32.mrf.mxu0
    %v377 = vadd.f32 %v109, %v376
    %378 = vdwg.mxu0
    %379 = vmatprep.subr.bf16.mxu0 %v273
    %380 = vmatpush1.bf16.msra.mxu0 %v272
    %381 = vmatprep.subr.bf16.mxu0 %v269
    %382 = vmatpush1.bf16.msra.mxu0 %v268
    %383 = vmatprep.subr.bf16.mxu0 %v265
    %384 = vmatpush1.bf16.msra.mxu0 %v264
    %385 = vmatprep.subr.bf16.mxu0 %v261
    %386 = vmatpush1.bf16.msra.mxu0 %v260
    %387 = vmatprep.subr.bf16.mxu0 %v257
    %388 = vmatpush1.bf16.msra.mxu0 %v256
    %389 = vmatprep.subr.bf16.mxu0 %v253
    %390 = vmatpush1.bf16.msra.mxu0 %v252
    %391 = vmatprep.subr.bf16.mxu0 %v249
    %392 = vmatpush1.bf16.msra.mxu0 %v248
    %393 = vmatprep.subr.bf16.mxu0 %v245
    %394 = vmatpush1.bf16.msra.mxu0 %v244
    %395 = vmatprep.subr.bf16.mxu0 0
    %396 = vmatpush2.bf16.msra.mxu0 0
    %397 = vmatprep.subr.bf16.mxu0 0
    %398 = vmatpush2.bf16.msra.mxu0 0
    %399 = vmatprep.subr.bf16.mxu0 0
    %400 = vmatpush2.bf16.msra.mxu0 0
    %401 = vmatprep.subr.bf16.mxu0 0
    %402 = vmatpush2.bf16.msra.mxu0 0
    %403 = vmatprep.subr.bf16.mxu0 0
    %404 = vmatpush2.bf16.msra.mxu0 0
    %405 = vmatprep.subr.bf16.mxu0 0
    %406 = vmatpush2.bf16.msra.mxu0 0
    %407 = vmatprep.subr.bf16.mxu0 0
    %408 = vmatpush2.bf16.msra.mxu0 0
    %409 = vmatprep.subr.bf16.mxu0 0
    %410 = vmatpush2.bf16.msra.mxu0 0
    %411 = vmatprep.mubr.bf16.mxu0 0
    %412 = vmatmul.mubr.bf16.gmra.mxu0 %v138
    %v413 = vpop.f32.mrf.mxu0
    %v414 = vadd.f32 %v113, %v413
    %v415 = vpop.f32.mrf.mxu0
    %v416 = vadd.f32 %v117, %v415
    %v417 = vpop.f32.mrf.mxu0
    %v418 = vadd.f32 %v113, %v417
    %v419 = vpop.f32.mrf.mxu0
    %v420 = vadd.f32 %v117, %v419
    %421 = vmatprep.mubr.bf16.mxu0 0
    %422 = vmatmul.mubr.bf16.gmra.mxu0 %v139
    %v423 = vpop.f32.mrf.mxu0
    %v424 = vadd.f32 %v113, %v423
    %v425 = vpop.f32.mrf.mxu0
    %v426 = vadd.f32 %v117, %v425
    %v427 = vpop.f32.mrf.mxu0
    %v428 = vadd.f32 %v113, %v427
    %v429 = vpop.f32.mrf.mxu0
    %v430 = vadd.f32 %v117, %v429
    %431 = vmatprep.mubr.bf16.mxu0 0
    %432 = vmatmul.mubr.bf16.gmra.mxu0 %v140
    %v433 = vpop.f32.mrf.mxu0
    %v434 = vadd.f32 %v113, %v433
    %v435 = vpop.f32.mrf.mxu0
    %v436 = vadd.f32 %v117, %v435
    %v437 = vpop.f32.mrf.mxu0
    %v438 = vadd.f32 %v113, %v437
    %v439 = vpop.f32.mrf.mxu0
    %v440 = vadd.f32 %v117, %v439
    %441 = vmatprep.mubr.bf16.mxu0 0
    %442 = vmatmul.mubr.bf16.gmra.mxu0 %v141
    %v443 = vpop.f32.mrf.mxu0
    %v444 = vadd.f32 %v113, %v443
    %v445 = vpop.f32.mrf.mxu0
    %v446 = vadd.f32 %v117, %v445
    %v447 = vpop.f32.mrf.mxu0
    %v448 = vadd.f32 %v113, %v447
    %v449 = vpop.f32.mrf.mxu0
    %v450 = vadd.f32 %v117, %v449
    %451 = vdwg.mxu0
    %452 = vst [vmem:[#allocation2] sm:$0xff] %v341
    %453 = vst [vmem:[#allocation2 + $0x8] sm:$0xff] %v343
    %454 = vst [vmem:[#allocation2 + $0x10] sm:$0xff] %v414
    %455 = vst [vmem:[#allocation2 + $0x18] sm:$0xff] %v416
    %456 = vst [vmem:[#allocation2 + $0x20] sm:$0xff] %v345
    %457 = vst [vmem:[#allocation2 + $0x28] sm:$0xff] %v347
    %458 = vst [vmem:[#allocation2 + $0x30] sm:$0xff] %v418
    %459 = vst [vmem:[#allocation2 + $0x38] sm:$0xff] %v420
    %460 = vst [vmem:[#allocation2 + $0x40] sm:$0xff] %v351
    %461 = vst [vmem:[#allocation2 + $0x48] sm:$0xff] %v353
    %462 = vst [vmem:[#allocation2 + $0x50] sm:$0xff] %v424
    %463 = vst [vmem:[#allocation2 + $0x58] sm:$0xff] %v426
    %464 = vst [vmem:[#allocation2 + $0x60] sm:$0xff] %v355
    %465 = vst [vmem:[#allocation2 + $0x68] sm:$0xff] %v357
    %466 = vst [vmem:[#allocation2 + $0x70] sm:$0xff] %v428
    %467 = vst [vmem:[#allocation2 + $0x78] sm:$0xff] %v430
    %468 = vst [vmem:[#allocation2 + $0x80] sm:$0xff] %v361
    %469 = vst [vmem:[#allocation2 + $0x88] sm:$0xff] %v363
    %470 = vst [vmem:[#allocation2 + $0x90] sm:$0xff] %v434
    %471 = vst [vmem:[#allocation2 + $0x98] sm:$0xff] %v436
    %472 = vst [vmem:[#allocation2 + $0xa0] sm:$0xff] %v365
    %473 = vst [vmem:[#allocation2 + $0xa8] sm:$0xff] %v367
    %474 = vst [vmem:[#allocation2 + $0xb0] sm:$0xff] %v438
    %475 = vst [vmem:[#allocation2 + $0xb8] sm:$0xff] %v440
    %476 = vst [vmem:[#allocation2 + $0xc0] sm:$0xff] %v371
    %477 = vst [vmem:[#allocation2 + $0xc8] sm:$0xff] %v373
    %478 = vst [vmem:[#allocation2 + $0xd0] sm:$0xff] %v444
    %479 = vst [vmem:[#allocation2 + $0xd8] sm:$0xff] %v446
    %480 = vst [vmem:[#allocation2 + $0xe0] sm:$0xff] %v375
    %481 = vst [vmem:[#allocation2 + $0xe8] sm:$0xff] %v377
    %482 = vst [vmem:[#allocation2 + $0xf0] sm:$0xff] %v448
    %483 = vst [vmem:[#allocation2 + $0xf8] sm:$0xff] %v450
    %p484 = scmp.eq.s32.totalorder 0, 0
    // Predicated region
    $region30: #{tpu_custom_call.1} parent=1 // pred_check
      %p485 = pneg %p484
    $region31: #{tpu_custom_call.1} parent=1 // pred_check_branch
      %487 = sbr.rel (%p485) target = $region33
    $region32: #{tpu_custom_call.1} parent=1 // pred_region
      %488 = vst [vmem:[#allocation3] sm:$0xff] 0.0
      %489 = vst [vmem:[#allocation4] sm:$0xff] 0.0
    $region33: #{tpu_custom_call.1} parent=1 // pred_fallthru
      _
    %v490 = vld [vmem:[#allocation3] sm:$0xff]
    %v491 = vld [vmem:[#allocation4] sm:$0xff]
    %s492 = smul.u32 0, 4
    %s493 = smul.addr %s492, 8
    %s494 = scalar_lea.vmem [#allocation2], %s493
    %v495 = vld [vmem:[%s494] sm:$0xff]
    %v496 = vld [vmem:[%s494 + $0x8] sm:$0xff]
    %v497 = vld [vmem:[%s494 + $0x10] sm:$0xff]
    %v498 = vld [vmem:[%s494 + $0x18] sm:$0xff]
    %v499 = vpack.c.bf16 %v490, %v490
    %v500 = vld [vmem:[#allocation10] sm:$0xff]
    %v501 = vld [vmem:[#allocation10 + $0x8] sm:$0xff]
    %v502 = vld [vmem:[#allocation10 + $0x10] sm:$0xff]
    %v503 = vld [vmem:[#allocation10 + $0x18] sm:$0xff]
    %v504 = vld [vmem:[#allocation10 + $0x20] sm:$0xff]
    %v505 = vld [vmem:[#allocation10 + $0x28] sm:$0xff]
    %v506 = vld [vmem:[#allocation10 + $0x30] sm:$0xff]
    %v507 = vld [vmem:[#allocation10 + $0x38] sm:$0xff]
    %v508 = vld [vmem:[#allocation10 + $0x40] sm:$0xff]
    %v509 = vld [vmem:[#allocation10 + $0x48] sm:$0xff]
    %v510 = vld [vmem:[#allocation10 + $0x50] sm:$0xff]
    %v511 = vld [vmem:[#allocation10 + $0x58] sm:$0xff]
    %v512 = vld [vmem:[#allocation10 + $0x60] sm:$0xff]
    %v513 = vld [vmem:[#allocation10 + $0x68] sm:$0xff]
    %v514 = vld [vmem:[#allocation10 + $0x70] sm:$0xff]
    %v515 = vld [vmem:[#allocation10 + $0x78] sm:$0xff]
    %v516 = vld [vmem:[#allocation10 + $0x80] sm:$0xff]
    %v517 = vld [vmem:[#allocation10 + $0x88] sm:$0xff]
    %v518 = vld [vmem:[#allocation10 + $0x90] sm:$0xff]
    %v519 = vld [vmem:[#allocation10 + $0x98] sm:$0xff]
    %v520 = vld [vmem:[#allocation10 + $0xa0] sm:$0xff]
    %v521 = vld [vmem:[#allocation10 + $0xa8] sm:$0xff]
    %v522 = vld [vmem:[#allocation10 + $0xb0] sm:$0xff]
    %v523 = vld [vmem:[#allocation10 + $0xb8] sm:$0xff]
    %v524 = vld [vmem:[#allocation10 + $0xc0] sm:$0xff]
    %v525 = vld [vmem:[#allocation10 + $0xc8] sm:$0xff]
    %v526 = vld [vmem:[#allocation10 + $0xd0] sm:$0xff]
    %v527 = vld [vmem:[#allocation10 + $0xd8] sm:$0xff]
    %v528 = vld [vmem:[#allocation10 + $0xe0] sm:$0xff]
    %v529 = vld [vmem:[#allocation10 + $0xe8] sm:$0xff]
    %v530 = vld [vmem:[#allocation10 + $0xf0] sm:$0xff]
    %v531 = vld [vmem:[#allocation10 + $0xf8] sm:$0xff]
    %v564 = vunpack.c.l.b16 %v500
    %v565 = vunpack.c.h.b16 %v500
    %v566 = vunpack.c.l.b16 %v501
    %v567 = vunpack.c.h.b16 %v501
    %v568 = vunpack.c.l.b16 %v502
    %v569 = vunpack.c.h.b16 %v502
    %v570 = vunpack.c.l.b16 %v503
    %v571 = vunpack.c.h.b16 %v503
    %v572 = vunpack.c.l.b16 %v504
    %v573 = vunpack.c.h.b16 %v504
    %v574 = vunpack.c.l.b16 %v505
    %v575 = vunpack.c.h.b16 %v505
    %v576 = vunpack.c.l.b16 %v506
    %v577 = vunpack.c.h.b16 %v506
    %v578 = vunpack.c.l.b16 %v507
    %v579 = vunpack.c.h.b16 %v507
    %v580 = vunpack.c.l.b16 %v508
    %v581 = vunpack.c.h.b16 %v508
    %v582 = vunpack.c.l.b16 %v509
    %v583 = vunpack.c.h.b16 %v509
    %v584 = vunpack.c.l.b16 %v510
    %v585 = vunpack.c.h.b16 %v510
    %v586 = vunpack.c.l.b16 %v511
    %v587 = vunpack.c.h.b16 %v511
    %v588 = vunpack.c.l.b16 %v512
    %v589 = vunpack.c.h.b16 %v512
    %v590 = vunpack.c.l.b16 %v513
    %v591 = vunpack.c.h.b16 %v513
    %v592 = vunpack.c.l.b16 %v514
    %v593 = vunpack.c.h.b16 %v514
    %v594 = vunpack.c.l.b16 %v515
    %v595 = vunpack.c.h.b16 %v515
    %v596 = vunpack.c.l.b16 %v516
    %v597 = vunpack.c.h.b16 %v516
    %v598 = vunpack.c.l.b16 %v517
    %v599 = vunpack.c.h.b16 %v517
    %v600 = vunpack.c.l.b16 %v518
    %v601 = vunpack.c.h.b16 %v518
    %v602 = vunpack.c.l.b16 %v519
    %v603 = vunpack.c.h.b16 %v519
    %v604 = vunpack.c.l.b16 %v520
    %v605 = vunpack.c.h.b16 %v520
    %v606 = vunpack.c.l.b16 %v521
    %v607 = vunpack.c.h.b16 %v521
    %v608 = vunpack.c.l.b16 %v522
    %v609 = vunpack.c.h.b16 %v522
    %v610 = vunpack.c.l.b16 %v523
    %v611 = vunpack.c.h.b16 %v523
    %v612 = vunpack.c.l.b16 %v524
    %v613 = vunpack.c.h.b16 %v524
    %v614 = vunpack.c.l.b16 %v525
    %v615 = vunpack.c.h.b16 %v525
    %v616 = vunpack.c.l.b16 %v526
    %v617 = vunpack.c.h.b16 %v526
    %v618 = vunpack.c.l.b16 %v527
    %v619 = vunpack.c.h.b16 %v527
    %v620 = vunpack.c.l.b16 %v528
    %v621 = vunpack.c.h.b16 %v528
    %v622 = vunpack.c.l.b16 %v529
    %v623 = vunpack.c.h.b16 %v529
    %v624 = vunpack.c.l.b16 %v530
    %v625 = vunpack.c.h.b16 %v530
    %v626 = vunpack.c.l.b16 %v531
    %v627 = vunpack.c.h.b16 %v531
    %v628 = vpack.c.b16 %v568, %v564
    %v629 = vpack.c.b16 %v569, %v565
    %v630 = vpack.c.b16 %v570, %v566
    %v631 = vpack.c.b16 %v571, %v567
    %v632 = vpack.c.b16 %v576, %v572
    %v633 = vpack.c.b16 %v577, %v573
    %v634 = vpack.c.b16 %v578, %v574
    %v635 = vpack.c.b16 %v579, %v575
    %v636 = vpack.c.b16 %v584, %v580
    %v637 = vpack.c.b16 %v585, %v581
    %v638 = vpack.c.b16 %v586, %v582
    %v639 = vpack.c.b16 %v587, %v583
    %v640 = vpack.c.b16 %v592, %v588
    %v641 = vpack.c.b16 %v593, %v589
    %v642 = vpack.c.b16 %v594, %v590
    %v643 = vpack.c.b16 %v595, %v591
    %v644 = vpack.c.b16 %v600, %v596
    %v645 = vpack.c.b16 %v601, %v597
    %v646 = vpack.c.b16 %v602, %v598
    %v647 = vpack.c.b16 %v603, %v599
    %v648 = vpack.c.b16 %v608, %v604
    %v649 = vpack.c.b16 %v609, %v605
    %v650 = vpack.c.b16 %v610, %v606
    %v651 = vpack.c.b16 %v611, %v607
    %v652 = vpack.c.b16 %v616, %v612
    %v653 = vpack.c.b16 %v617, %v613
    %v654 = vpack.c.b16 %v618, %v614
    %v655 = vpack.c.b16 %v619, %v615
    %v656 = vpack.c.b16 %v624, %v620
    %v657 = vpack.c.b16 %v625, %v621
    %v658 = vpack.c.b16 %v626, %v622
    %v659 = vpack.c.b16 %v627, %v623
    %692 = vmatprep.subr.bf16.mxu0 %v657
    %693 = vmatpush1.bf16.msra.mxu0 %v656
    %694 = vmatprep.subr.bf16.mxu0 %v653
    %695 = vmatpush1.bf16.msra.mxu0 %v652
    %696 = vmatprep.subr.bf16.mxu0 %v649
    %697 = vmatpush1.bf16.msra.mxu0 %v648
    %698 = vmatprep.subr.bf16.mxu0 %v645
    %699 = vmatpush1.bf16.msra.mxu0 %v644
    %700 = vmatprep.subr.bf16.mxu0 %v641
    %701 = vmatpush1.bf16.msra.mxu0 %v640
    %702 = vmatprep.subr.bf16.mxu0 %v637
    %703 = vmatpush1.bf16.msra.mxu0 %v636
    %704 = vmatprep.subr.bf16.mxu0 %v633
    %705 = vmatpush1.bf16.msra.mxu0 %v632
    %706 = vmatprep.subr.bf16.mxu0 %v629
    %707 = vmatpush1.bf16.msra.mxu0 %v628
    %708 = vmatprep.subr.bf16.mxu0 0
    %709 = vmatpush2.bf16.msra.mxu0 0
    %710 = vmatprep.subr.bf16.mxu0 0
    %711 = vmatpush2.bf16.msra.mxu0 0
    %712 = vmatprep.subr.bf16.mxu0 0
    %713 = vmatpush2.bf16.msra.mxu0 0
    %714 = vmatprep.subr.bf16.mxu0 0
    %715 = vmatpush2.bf16.msra.mxu0 0
    %716 = vmatprep.subr.bf16.mxu0 0
    %717 = vmatpush2.bf16.msra.mxu0 0
    %718 = vmatprep.subr.bf16.mxu0 0
    %719 = vmatpush2.bf16.msra.mxu0 0
    %720 = vmatprep.subr.bf16.mxu0 0
    %721 = vmatpush2.bf16.msra.mxu0 0
    %722 = vmatprep.subr.bf16.mxu0 0
    %723 = vmatpush2.bf16.msra.mxu0 0
    %724 = vmatprep.mubr.bf16.mxu0 0
    %725 = vmatmul.mubr.bf16.gmra.mxu0 %v499
    %v726 = vpop.f32.mrf.mxu0
    %v727 = vadd.f32 0.0, %v726
    %v728 = vpop.f32.mrf.mxu0
    %v729 = vadd.f32 0.0, %v728
    %v730 = vpop.f32.mrf.mxu0
    %v731 = vpop.f32.mrf.mxu0
    %732 = vdwg.mxu0
    %733 = vmatprep.subr.bf16.mxu0 %v659
    %734 = vmatpush1.bf16.msra.mxu0 %v658
    %735 = vmatprep.subr.bf16.mxu0 %v655
    %736 = vmatpush1.bf16.msra.mxu0 %v654
    %737 = vmatprep.subr.bf16.mxu0 %v651
    %738 = vmatpush1.bf16.msra.mxu0 %v650
    %739 = vmatprep.subr.bf16.mxu0 %v647
    %740 = vmatpush1.bf16.msra.mxu0 %v646
    %741 = vmatprep.subr.bf16.mxu0 %v643
    %742 = vmatpush1.bf16.msra.mxu0 %v642
    %743 = vmatprep.subr.bf16.mxu0 %v639
    %744 = vmatpush1.bf16.msra.mxu0 %v638
    %745 = vmatprep.subr.bf16.mxu0 %v635
    %746 = vmatpush1.bf16.msra.mxu0 %v634
    %747 = vmatprep.subr.bf16.mxu0 %v631
    %748 = vmatpush1.bf16.msra.mxu0 %v630
    %749 = vmatprep.subr.bf16.mxu0 0
    %750 = vmatpush2.bf16.msra.mxu0 0
    %751 = vmatprep.subr.bf16.mxu0 0
    %752 = vmatpush2.bf16.msra.mxu0 0
    %753 = vmatprep.subr.bf16.mxu0 0
    %754 = vmatpush2.bf16.msra.mxu0 0
    %755 = vmatprep.subr.bf16.mxu0 0
    %756 = vmatpush2.bf16.msra.mxu0 0
    %757 = vmatprep.subr.bf16.mxu0 0
    %758 = vmatpush2.bf16.msra.mxu0 0
    %759 = vmatprep.subr.bf16.mxu0 0
    %760 = vmatpush2.bf16.msra.mxu0 0
    %761 = vmatprep.subr.bf16.mxu0 0
    %762 = vmatpush2.bf16.msra.mxu0 0
    %763 = vmatprep.subr.bf16.mxu0 0
    %764 = vmatpush2.bf16.msra.mxu0 0
    %765 = vmatprep.mubr.bf16.mxu0 0
    %766 = vmatmul.mubr.bf16.gmra.mxu0 %v499
    %v767 = vpop.f32.mrf.mxu0
    %v768 = vadd.f32 0.0, %v767
    %v769 = vpop.f32.mrf.mxu0
    %v770 = vadd.f32 0.0, %v769
    %v771 = vpop.f32.mrf.mxu0
    %v772 = vpop.f32.mrf.mxu0
    %773 = vdwg.mxu0
    %v774 = vadd.f32 %v495, %v727
    %v775 = vadd.f32 %v496, %v729
    %v776 = vadd.f32 %v497, %v768
    %v777 = vadd.f32 %v498, %v770
    %v778 = vxor.u32 %v774, 2147483648
    %v779 = vmul.f32 %v778, 1.442695
    %v780 = vpow.pop %v779
    %v781 = vadd.f32 %v780, 1.0
    %v782 = vrcp.pop %v781
    %v783 = vmul.f32 1.0, %v782
    %v784 = vxor.u32 %v775, 2147483648
    %v785 = vmul.f32 %v784, 1.442695
    %v786 = vpow.pop %v785
    %v787 = vadd.f32 %v786, 1.0
    %v788 = vrcp.pop %v787
    %v789 = vmul.f32 1.0, %v788
    %v790 = vtanh.pop %v776
    %v791 = vxor.u32 %v777, 2147483648
    %v792 = vmul.f32 %v791, 1.442695
    %v793 = vpow.pop %v792
    %v794 = vadd.f32 %v793, 1.0
    %v795 = vrcp.pop %v794
    %v796 = vmul.f32 1.0, %v795
    %v797 = vmul.f32 %v789, %v491
    %v798 = vmul.f32 %v783, %v790
    %v799 = vadd.f32 %v797, %v798
    %v800 = vtanh.pop %v799
    %v801 = vmul.f32 %v796, %v800
    %s802 = smul.u32 1, 4
    %s803 = smul.addr %s802, 8
    %s804 = scalar_lea.vmem [#allocation2], %s803
    %v805 = vld [vmem:[%s804] sm:$0xff]
    %v806 = vld [vmem:[%s804 + $0x8] sm:$0xff]
    %v807 = vld [vmem:[%s804 + $0x10] sm:$0xff]
    %v808 = vld [vmem:[%s804 + $0x18] sm:$0xff]
    %v809 = vpack.c.bf16 %v801, %v801
    %810 = vmatprep.subr.bf16.mxu0 %v657
    %811 = vmatpush1.bf16.msra.mxu0 %v656
    %812 = vmatprep.subr.bf16.mxu0 %v653
    %813 = vmatpush1.bf16.msra.mxu0 %v652
    %814 = vmatprep.subr.bf16.mxu0 %v649
    %815 = vmatpush1.bf16.msra.mxu0 %v648
    %816 = vmatprep.subr.bf16.mxu0 %v645
    %817 = vmatpush1.bf16.msra.mxu0 %v644
    %818 = vmatprep.subr.bf16.mxu0 %v641
    %819 = vmatpush1.bf16.msra.mxu0 %v640
    %820 = vmatprep.subr.bf16.mxu0 %v637
    %821 = vmatpush1.bf16.msra.mxu0 %v636
    %822 = vmatprep.subr.bf16.mxu0 %v633
    %823 = vmatpush1.bf16.msra.mxu0 %v632
    %824 = vmatprep.subr.bf16.mxu0 %v629
    %825 = vmatpush1.bf16.msra.mxu0 %v628
    %826 = vmatprep.subr.bf16.mxu0 0
    %827 = vmatpush2.bf16.msra.mxu0 0
    %828 = vmatprep.subr.bf16.mxu0 0
    %829 = vmatpush2.bf16.msra.mxu0 0
    %830 = vmatprep.subr.bf16.mxu0 0
    %831 = vmatpush2.bf16.msra.mxu0 0
    %832 = vmatprep.subr.bf16.mxu0 0
    %833 = vmatpush2.bf16.msra.mxu0 0
    %834 = vmatprep.subr.bf16.mxu0 0
    %835 = vmatpush2.bf16.msra.mxu0 0
    %836 = vmatprep.subr.bf16.mxu0 0
    %837 = vmatpush2.bf16.msra.mxu0 0
    %838 = vmatprep.subr.bf16.mxu0 0
    %839 = vmatpush2.bf16.msra.mxu0 0
    %840 = vmatprep.subr.bf16.mxu0 0
    %841 = vmatpush2.bf16.msra.mxu0 0
    %842 = vmatprep.mubr.bf16.mxu0 0
    %843 = vmatmul.mubr.bf16.gmra.mxu0 %v809
    %v844 = vpop.f32.mrf.mxu0
    %v845 = vadd.f32 0.0, %v844
    %v846 = vpop.f32.mrf.mxu0
    %v847 = vadd.f32 0.0, %v846
    %v848 = vpop.f32.mrf.mxu0
    %v849 = vpop.f32.mrf.mxu0
    %850 = vdwg.mxu0
    %851 = vmatprep.subr.bf16.mxu0 %v659
    %852 = vmatpush1.bf16.msra.mxu0 %v658
    %853 = vmatprep.subr.bf16.mxu0 %v655
    %854 = vmatpush1.bf16.msra.mxu0 %v654
    %855 = vmatprep.subr.bf16.mxu0 %v651
    %856 = vmatpush1.bf16.msra.mxu0 %v650
    %857 = vmatprep.subr.bf16.mxu0 %v647
    %858 = vmatpush1.bf16.msra.mxu0 %v646
    %859 = vmatprep.subr.bf16.mxu0 %v643
    %860 = vmatpush1.bf16.msra.mxu0 %v642
    %861 = vmatprep.subr.bf16.mxu0 %v639
    %862 = vmatpush1.bf16.msra.mxu0 %v638
    %863 = vmatprep.subr.bf16.mxu0 %v635
    %864 = vmatpush1.bf16.msra.mxu0 %v634
    %865 = vmatprep.subr.bf16.mxu0 %v631
    %866 = vmatpush1.bf16.msra.mxu0 %v630
    %867 = vmatprep.subr.bf16.mxu0 0
    %868 = vmatpush2.bf16.msra.mxu0 0
    %869 = vmatprep.subr.bf16.mxu0 0
    %870 = vmatpush2.bf16.msra.mxu0 0
    %871 = vmatprep.subr.bf16.mxu0 0
    %872 = vmatpush2.bf16.msra.mxu0 0
    %873 = vmatprep.subr.bf16.mxu0 0
    %874 = vmatpush2.bf16.msra.mxu0 0
    %875 = vmatprep.subr.bf16.mxu0 0
    %876 = vmatpush2.bf16.msra.mxu0 0
    %877 = vmatprep.subr.bf16.mxu0 0
    %878 = vmatpush2.bf16.msra.mxu0 0
    %879 = vmatprep.subr.bf16.mxu0 0
    %880 = vmatpush2.bf16.msra.mxu0 0
    %881 = vmatprep.subr.bf16.mxu0 0
    %882 = vmatpush2.bf16.msra.mxu0 0
    %883 = vmatprep.mubr.bf16.mxu0 0
    %884 = vmatmul.mubr.bf16.gmra.mxu0 %v809
    %v885 = vpop.f32.mrf.mxu0
    %v886 = vadd.f32 0.0, %v885
    %v887 = vpop.f32.mrf.mxu0
    %v888 = vadd.f32 0.0, %v887
    %v889 = vpop.f32.mrf.mxu0
    %v890 = vpop.f32.mrf.mxu0
    %891 = vdwg.mxu0
    %v892 = vadd.f32 %v805, %v845
    %v893 = vadd.f32 %v806, %v847
    %v894 = vadd.f32 %v807, %v886
    %v895 = vadd.f32 %v808, %v888
    %v896 = vxor.u32 %v892, 2147483648
    %v897 = vmul.f32 %v896, 1.442695
    %v898 = vpow.pop %v897
    %v899 = vadd.f32 %v898, 1.0
    %v900 = vrcp.pop %v899
    %v901 = vmul.f32 1.0, %v900
    %v902 = vxor.u32 %v893, 2147483648
    %v903 = vmul.f32 %v902, 1.442695
    %v904 = vpow.pop %v903
    %v905 = vadd.f32 %v904, 1.0
    %v906 = vrcp.pop %v905
    %v907 = vmul.f32 1.0, %v906
    %v908 = vtanh.pop %v894
    %v909 = vxor.u32 %v895, 2147483648
    %v910 = vmul.f32 %v909, 1.442695
    %v911 = vpow.pop %v910
    %v912 = vadd.f32 %v911, 1.0
    %v913 = vrcp.pop %v912
    %v914 = vmul.f32 1.0, %v913
    %v915 = vmul.f32 %v907, %v799
    %v916 = vmul.f32 %v901, %v908
    %v917 = vadd.f32 %v915, %v916
    %v918 = vtanh.pop %v917
    %v919 = vmul.f32 %v914, %v918
    %s920 = smul.u32 2, 4
    %s921 = smul.addr %s920, 8
    %s922 = scalar_lea.vmem [#allocation2], %s921
    %v923 = vld [vmem:[%s922] sm:$0xff]
    %v924 = vld [vmem:[%s922 + $0x8] sm:$0xff]
    %v925 = vld [vmem:[%s922 + $0x10] sm:$0xff]
    %v926 = vld [vmem:[%s922 + $0x18] sm:$0xff]
    %v927 = vpack.c.bf16 %v919, %v919
    %928 = vmatprep.subr.bf16.mxu0 %v657
    %929 = vmatpush1.bf16.msra.mxu0 %v656
    %930 = vmatprep.subr.bf16.mxu0 %v653
    %931 = vmatpush1.bf16.msra.mxu0 %v652
    %932 = vmatprep.subr.bf16.mxu0 %v649
    %933 = vmatpush1.bf16.msra.mxu0 %v648
    %934 = vmatprep.subr.bf16.mxu0 %v645
    %935 = vmatpush1.bf16.msra.mxu0 %v644
    %936 = vmatprep.subr.bf16.mxu0 %v641
    %937 = vmatpush1.bf16.msra.mxu0 %v640
    %938 = vmatprep.subr.bf16.mxu0 %v637
    %939 = vmatpush1.bf16.msra.mxu0 %v636
    %940 = vmatprep.subr.bf16.mxu0 %v633
    %941 = vmatpush1.bf16.msra.mxu0 %v632
    %942 = vmatprep.subr.bf16.mxu0 %v629
    %943 = vmatpush1.bf16.msra.mxu0 %v628
    %944 = vmatprep.subr.bf16.mxu0 0
    %945 = vmatpush2.bf16.msra.mxu0 0
    %946 = vmatprep.subr.bf16.mxu0 0
    %947 = vmatpush2.bf16.msra.mxu0 0
    %948 = vmatprep.subr.bf16.mxu0 0
    %949 = vmatpush2.bf16.msra.mxu0 0
    %950 = vmatprep.subr.bf16.mxu0 0
    %951 = vmatpush2.bf16.msra.mxu0 0
    %952 = vmatprep.subr.bf16.mxu0 0
    %953 = vmatpush2.bf16.msra.mxu0 0
    %954 = vmatprep.subr.bf16.mxu0 0
    %955 = vmatpush2.bf16.msra.mxu0 0
    %956 = vmatprep.subr.bf16.mxu0 0
    %957 = vmatpush2.bf16.msra.mxu0 0
    %958 = vmatprep.subr.bf16.mxu0 0
    %959 = vmatpush2.bf16.msra.mxu0 0
    %960 = vmatprep.mubr.bf16.mxu0 0
    %961 = vmatmul.mubr.bf16.gmra.mxu0 %v927
    %v962 = vpop.f32.mrf.mxu0
    %v963 = vadd.f32 0.0, %v962
    %v964 = vpop.f32.mrf.mxu0
    %v965 = vadd.f32 0.0, %v964
    %v966 = vpop.f32.mrf.mxu0
    %v967 = vpop.f32.mrf.mxu0
    %968 = vdwg.mxu0
    %969 = vmatprep.subr.bf16.mxu0 %v659
    %970 = vmatpush1.bf16.msra.mxu0 %v658
    %971 = vmatprep.subr.bf16.mxu0 %v655
    %972 = vmatpush1.bf16.msra.mxu0 %v654
    %973 = vmatprep.subr.bf16.mxu0 %v651
    %974 = vmatpush1.bf16.msra.mxu0 %v650
    %975 = vmatprep.subr.bf16.mxu0 %v647
    %976 = vmatpush1.bf16.msra.mxu0 %v646
    %977 = vmatprep.subr.bf16.mxu0 %v643
    %978 = vmatpush1.bf16.msra.mxu0 %v642
    %979 = vmatprep.subr.bf16.mxu0 %v639
    %980 = vmatpush1.bf16.msra.mxu0 %v638
    %981 = vmatprep.subr.bf16.mxu0 %v635
    %982 = vmatpush1.bf16.msra.mxu0 %v634
    %983 = vmatprep.subr.bf16.mxu0 %v631
    %984 = vmatpush1.bf16.msra.mxu0 %v630
    %985 = vmatprep.subr.bf16.mxu0 0
    %986 = vmatpush2.bf16.msra.mxu0 0
    %987 = vmatprep.subr.bf16.mxu0 0
    %988 = vmatpush2.bf16.msra.mxu0 0
    %989 = vmatprep.subr.bf16.mxu0 0
    %990 = vmatpush2.bf16.msra.mxu0 0
    %991 = vmatprep.subr.bf16.mxu0 0
    %992 = vmatpush2.bf16.msra.mxu0 0
    %993 = vmatprep.subr.bf16.mxu0 0
    %994 = vmatpush2.bf16.msra.mxu0 0
    %995 = vmatprep.subr.bf16.mxu0 0
    %996 = vmatpush2.bf16.msra.mxu0 0
    %997 = vmatprep.subr.bf16.mxu0 0
    %998 = vmatpush2.bf16.msra.mxu0 0
    %999 = vmatprep.subr.bf16.mxu0 0
    %1000 = vmatpush2.bf16.msra.mxu0 0
    %1001 = vmatprep.mubr.bf16.mxu0 0
    %1002 = vmatmul.mubr.bf16.gmra.mxu0 %v927
    %v1003 = vpop.f32.mrf.mxu0
    %v1004 = vadd.f32 0.0, %v1003
    %v1005 = vpop.f32.mrf.mxu0
    %v1006 = vadd.f32 0.0, %v1005
    %v1007 = vpop.f32.mrf.mxu0
    %v1008 = vpop.f32.mrf.mxu0
    %1009 = vdwg.mxu0
    %v1010 = vadd.f32 %v923, %v963
    %v1011 = vadd.f32 %v924, %v965
    %v1012 = vadd.f32 %v925, %v1004
    %v1013 = vadd.f32 %v926, %v1006
    %v1014 = vxor.u32 %v1010, 2147483648
    %v1015 = vmul.f32 %v1014, 1.442695
    %v1016 = vpow.pop %v1015
    %v1017 = vadd.f32 %v1016, 1.0
    %v1018 = vrcp.pop %v1017
    %v1019 = vmul.f32 1.0, %v1018
    %v1020 = vxor.u32 %v1011, 2147483648
    %v1021 = vmul.f32 %v1020, 1.442695
    %v1022 = vpow.pop %v1021
    %v1023 = vadd.f32 %v1022, 1.0
    %v1024 = vrcp.pop %v1023
    %v1025 = vmul.f32 1.0, %v1024
    %v1026 = vtanh.pop %v1012
    %v1027 = vxor.u32 %v1013, 2147483648
    %v1028 = vmul.f32 %v1027, 1.442695
    %v1029 = vpow.pop %v1028
    %v1030 = vadd.f32 %v1029, 1.0
    %v1031 = vrcp.pop %v1030
    %v1032 = vmul.f32 1.0, %v1031
    %v1033 = vmul.f32 %v1025, %v917
    %v1034 = vmul.f32 %v1019, %v1026
    %v1035 = vadd.f32 %v1033, %v1034
    %v1036 = vtanh.pop %v1035
    %v1037 = vmul.f32 %v1032, %v1036
    %s1038 = smul.u32 3, 4
    %s1039 = smul.addr %s1038, 8
    %s1040 = scalar_lea.vmem [#allocation2], %s1039
    %v1041 = vld [vmem:[%s1040] sm:$0xff]
    %v1042 = vld [vmem:[%s1040 + $0x8] sm:$0xff]
    %v1043 = vld [vmem:[%s1040 + $0x10] sm:$0xff]
    %v1044 = vld [vmem:[%s1040 + $0x18] sm:$0xff]
    %v1045 = vpack.c.bf16 %v1037, %v1037
    %1046 = vmatprep.subr.bf16.mxu0 %v657
    %1047 = vmatpush1.bf16.msra.mxu0 %v656
    %1048 = vmatprep.subr.bf16.mxu0 %v653
    %1049 = vmatpush1.bf16.msra.mxu0 %v652
    %1050 = vmatprep.subr.bf16.mxu0 %v649
    %1051 = vmatpush1.bf16.msra.mxu0 %v648
    %1052 = vmatprep.subr.bf16.mxu0 %v645
    %1053 = vmatpush1.bf16.msra.mxu0 %v644
    %1054 = vmatprep.subr.bf16.mxu0 %v641
    %1055 = vmatpush1.bf16.msra.mxu0 %v640
    %1056 = vmatprep.subr.bf16.mxu0 %v637
    %1057 = vmatpush1.bf16.msra.mxu0 %v636
    %1058 = vmatprep.subr.bf16.mxu0 %v633
    %1059 = vmatpush1.bf16.msra.mxu0 %v632
    %1060 = vmatprep.subr.bf16.mxu0 %v629
    %1061 = vmatpush1.bf16.msra.mxu0 %v628
    %1062 = vmatprep.subr.bf16.mxu0 0
    %1063 = vmatpush2.bf16.msra.mxu0 0
    %1064 = vmatprep.subr.bf16.mxu0 0
    %1065 = vmatpush2.bf16.msra.mxu0 0
    %1066 = vmatprep.subr.bf16.mxu0 0
    %1067 = vmatpush2.bf16.msra.mxu0 0
    %1068 = vmatprep.subr.bf16.mxu0 0
    %1069 = vmatpush2.bf16.msra.mxu0 0
    %1070 = vmatprep.subr.bf16.mxu0 0
    %1071 = vmatpush2.bf16.msra.mxu0 0
    %1072 = vmatprep.subr.bf16.mxu0 0
    %1073 = vmatpush2.bf16.msra.mxu0 0
    %1074 = vmatprep.subr.bf16.mxu0 0
    %1075 = vmatpush2.bf16.msra.mxu0 0
    %1076 = vmatprep.subr.bf16.mxu0 0
    %1077 = vmatpush2.bf16.msra.mxu0 0
    %1078 = vmatprep.mubr.bf16.mxu0 0
    %1079 = vmatmul.mubr.bf16.gmra.mxu0 %v1045
    %v1080 = vpop.f32.mrf.mxu0
    %v1081 = vadd.f32 0.0, %v1080
    %v1082 = vpop.f32.mrf.mxu0
    %v1083 = vadd.f32 0.0, %v1082
    %v1084 = vpop.f32.mrf.mxu0
    %v1085 = vpop.f32.mrf.mxu0
    %1086 = vdwg.mxu0
    %1087 = vmatprep.subr.bf16.mxu0 %v659
    %1088 = vmatpush1.bf16.msra.mxu0 %v658
    %1089 = vmatprep.subr.bf16.mxu0 %v655
    %1090 = vmatpush1.bf16.msra.mxu0 %v654
    %1091 = vmatprep.subr.bf16.mxu0 %v651
    %1092 = vmatpush1.bf16.msra.mxu0 %v650
    %1093 = vmatprep.subr.bf16.mxu0 %v647
    %1094 = vmatpush1.bf16.msra.mxu0 %v646
    %1095 = vmatprep.subr.bf16.mxu0 %v643
    %1096 = vmatpush1.bf16.msra.mxu0 %v642
    %1097 = vmatprep.subr.bf16.mxu0 %v639
    %1098 = vmatpush1.bf16.msra.mxu0 %v638
    %1099 = vmatprep.subr.bf16.mxu0 %v635
    %1100 = vmatpush1.bf16.msra.mxu0 %v634
    %1101 = vmatprep.subr.bf16.mxu0 %v631
    %1102 = vmatpush1.bf16.msra.mxu0 %v630
    %1103 = vmatprep.subr.bf16.mxu0 0
    %1104 = vmatpush2.bf16.msra.mxu0 0
    %1105 = vmatprep.subr.bf16.mxu0 0
    %1106 = vmatpush2.bf16.msra.mxu0 0
    %1107 = vmatprep.subr.bf16.mxu0 0
    %1108 = vmatpush2.bf16.msra.mxu0 0
    %1109 = vmatprep.subr.bf16.mxu0 0
    %1110 = vmatpush2.bf16.msra.mxu0 0
    %1111 = vmatprep.subr.bf16.mxu0 0
    %1112 = vmatpush2.bf16.msra.mxu0 0
    %1113 = vmatprep.subr.bf16.mxu0 0
    %1114 = vmatpush2.bf16.msra.mxu0 0
    %1115 = vmatprep.subr.bf16.mxu0 0
    %1116 = vmatpush2.bf16.msra.mxu0 0
    %1117 = vmatprep.subr.bf16.mxu0 0
    %1118 = vmatpush2.bf16.msra.mxu0 0
    %1119 = vmatprep.mubr.bf16.mxu0 0
    %1120 = vmatmul.mubr.bf16.gmra.mxu0 %v1045
    %v1121 = vpop.f32.mrf.mxu0
    %v1122 = vadd.f32 0.0, %v1121
    %v1123 = vpop.f32.mrf.mxu0
    %v1124 = vadd.f32 0.0, %v1123
    %v1125 = vpop.f32.mrf.mxu0
    %v1126 = vpop.f32.mrf.mxu0
    %1127 = vdwg.mxu0
    %v1128 = vadd.f32 %v1041, %v1081
    %v1129 = vadd.f32 %v1042, %v1083
    %v1130 = vadd.f32 %v1043, %v1122
    %v1131 = vadd.f32 %v1044, %v1124
    %v1132 = vxor.u32 %v1128, 2147483648
    %v1133 = vmul.f32 %v1132, 1.442695
    %v1134 = vpow.pop %v1133
    %v1135 = vadd.f32 %v1134, 1.0
    %v1136 = vrcp.pop %v1135
    %v1137 = vmul.f32 1.0, %v1136
    %v1138 = vxor.u32 %v1129, 2147483648
    %v1139 = vmul.f32 %v1138, 1.442695
    %v1140 = vpow.pop %v1139
    %v1141 = vadd.f32 %v1140, 1.0
    %v1142 = vrcp.pop %v1141
    %v1143 = vmul.f32 1.0, %v1142
    %v1144 = vtanh.pop %v1130
    %v1145 = vxor.u32 %v1131, 2147483648
    %v1146 = vmul.f32 %v1145, 1.442695
    %v1147 = vpow.pop %v1146
    %v1148 = vadd.f32 %v1147, 1.0
    %v1149 = vrcp.pop %v1148
    %v1150 = vmul.f32 1.0, %v1149
    %v1151 = vmul.f32 %v1143, %v1035
    %v1152 = vmul.f32 %v1137, %v1144
    %v1153 = vadd.f32 %v1151, %v1152
    %v1154 = vtanh.pop %v1153
    %v1155 = vmul.f32 %v1150, %v1154
    %s1156 = smul.u32 4, 4
    %s1157 = smul.addr %s1156, 8
    %s1158 = scalar_lea.vmem [#allocation2], %s1157
    %v1159 = vld [vmem:[%s1158] sm:$0xff]
    %v1160 = vld [vmem:[%s1158 + $0x8] sm:$0xff]
    %v1161 = vld [vmem:[%s1158 + $0x10] sm:$0xff]
    %v1162 = vld [vmem:[%s1158 + $0x18] sm:$0xff]
    %v1163 = vpack.c.bf16 %v1155, %v1155
    %1164 = vmatprep.subr.bf16.mxu0 %v657
    %1165 = vmatpush1.bf16.msra.mxu0 %v656
    %1166 = vmatprep.subr.bf16.mxu0 %v653
    %1167 = vmatpush1.bf16.msra.mxu0 %v652
    %1168 = vmatprep.subr.bf16.mxu0 %v649
    %1169 = vmatpush1.bf16.msra.mxu0 %v648
    %1170 = vmatprep.subr.bf16.mxu0 %v645
    %1171 = vmatpush1.bf16.msra.mxu0 %v644
    %1172 = vmatprep.subr.bf16.mxu0 %v641
    %1173 = vmatpush1.bf16.msra.mxu0 %v640
    %1174 = vmatprep.subr.bf16.mxu0 %v637
    %1175 = vmatpush1.bf16.msra.mxu0 %v636
    %1176 = vmatprep.subr.bf16.mxu0 %v633
    %1177 = vmatpush1.bf16.msra.mxu0 %v632
    %1178 = vmatprep.subr.bf16.mxu0 %v629
    %1179 = vmatpush1.bf16.msra.mxu0 %v628
    %1180 = vmatprep.subr.bf16.mxu0 0
    %1181 = vmatpush2.bf16.msra.mxu0 0
    %1182 = vmatprep.subr.bf16.mxu0 0
    %1183 = vmatpush2.bf16.msra.mxu0 0
    %1184 = vmatprep.subr.bf16.mxu0 0
    %1185 = vmatpush2.bf16.msra.mxu0 0
    %1186 = vmatprep.subr.bf16.mxu0 0
    %1187 = vmatpush2.bf16.msra.mxu0 0
    %1188 = vmatprep.subr.bf16.mxu0 0
    %1189 = vmatpush2.bf16.msra.mxu0 0
    %1190 = vmatprep.subr.bf16.mxu0 0
    %1191 = vmatpush2.bf16.msra.mxu0 0
    %1192 = vmatprep.subr.bf16.mxu0 0
    %1193 = vmatpush2.bf16.msra.mxu0 0
    %1194 = vmatprep.subr.bf16.mxu0 0
    %1195 = vmatpush2.bf16.msra.mxu0 0
    %1196 = vmatprep.mubr.bf16.mxu0 0
    %1197 = vmatmul.mubr.bf16.gmra.mxu0 %v1163
    %v1198 = vpop.f32.mrf.mxu0
    %v1199 = vadd.f32 0.0, %v1198
    %v1200 = vpop.f32.mrf.mxu0
    %v1201 = vadd.f32 0.0, %v1200
    %v1202 = vpop.f32.mrf.mxu0
    %v1203 = vpop.f32.mrf.mxu0
    %1204 = vdwg.mxu0
    %1205 = vmatprep.subr.bf16.mxu0 %v659
    %1206 = vmatpush1.bf16.msra.mxu0 %v658
    %1207 = vmatprep.subr.bf16.mxu0 %v655
    %1208 = vmatpush1.bf16.msra.mxu0 %v654
    %1209 = vmatprep.subr.bf16.mxu0 %v651
    %1210 = vmatpush1.bf16.msra.mxu0 %v650
    %1211 = vmatprep.subr.bf16.mxu0 %v647
    %1212 = vmatpush1.bf16.msra.mxu0 %v646
    %1213 = vmatprep.subr.bf16.mxu0 %v643
    %1214 = vmatpush1.bf16.msra.mxu0 %v642
    %1215 = vmatprep.subr.bf16.mxu0 %v639
    %1216 = vmatpush1.bf16.msra.mxu0 %v638
    %1217 = vmatprep.subr.bf16.mxu0 %v635
    %1218 = vmatpush1.bf16.msra.mxu0 %v634
    %1219 = vmatprep.subr.bf16.mxu0 %v631
    %1220 = vmatpush1.bf16.msra.mxu0 %v630
    %1221 = vmatprep.subr.bf16.mxu0 0
    %1222 = vmatpush2.bf16.msra.mxu0 0
    %1223 = vmatprep.subr.bf16.mxu0 0
    %1224 = vmatpush2.bf16.msra.mxu0 0
    %1225 = vmatprep.subr.bf16.mxu0 0
    %1226 = vmatpush2.bf16.msra.mxu0 0
    %1227 = vmatprep.subr.bf16.mxu0 0
    %1228 = vmatpush2.bf16.msra.mxu0 0
    %1229 = vmatprep.subr.bf16.mxu0 0
    %1230 = vmatpush2.bf16.msra.mxu0 0
    %1231 = vmatprep.subr.bf16.mxu0 0
    %1232 = vmatpush2.bf16.msra.mxu0 0
    %1233 = vmatprep.subr.bf16.mxu0 0
    %1234 = vmatpush2.bf16.msra.mxu0 0
    %1235 = vmatprep.subr.bf16.mxu0 0
    %1236 = vmatpush2.bf16.msra.mxu0 0
    %1237 = vmatprep.mubr.bf16.mxu0 0
    %1238 = vmatmul.mubr.bf16.gmra.mxu0 %v1163
    %v1239 = vpop.f32.mrf.mxu0
    %v1240 = vadd.f32 0.0, %v1239
    %v1241 = vpop.f32.mrf.mxu0
    %v1242 = vadd.f32 0.0, %v1241
    %v1243 = vpop.f32.mrf.mxu0
    %v1244 = vpop.f32.mrf.mxu0
    %1245 = vdwg.mxu0
    %v1246 = vadd.f32 %v1159, %v1199
    %v1247 = vadd.f32 %v1160, %v1201
    %v1248 = vadd.f32 %v1161, %v1240
    %v1249 = vadd.f32 %v1162, %v1242
    %v1250 = vxor.u32 %v1246, 2147483648
    %v1251 = vmul.f32 %v1250, 1.442695
    %v1252 = vpow.pop %v1251
    %v1253 = vadd.f32 %v1252, 1.0
    %v1254 = vrcp.pop %v1253
    %v1255 = vmul.f32 1.0, %v1254
    %v1256 = vxor.u32 %v1247, 2147483648
    %v1257 = vmul.f32 %v1256, 1.442695
    %v1258 = vpow.pop %v1257
    %v1259 = vadd.f32 %v1258, 1.0
    %v1260 = vrcp.pop %v1259
    %v1261 = vmul.f32 1.0, %v1260
    %v1262 = vtanh.pop %v1248
    %v1263 = vxor.u32 %v1249, 2147483648
    %v1264 = vmul.f32 %v1263, 1.442695
    %v1265 = vpow.pop %v1264
    %v1266 = vadd.f32 %v1265, 1.0
    %v1267 = vrcp.pop %v1266
    %v1268 = vmul.f32 1.0, %v1267
    %v1269 = vmul.f32 %v1261, %v1153
    %v1270 = vmul.f32 %v1255, %v1262
    %v1271 = vadd.f32 %v1269, %v1270
    %v1272 = vtanh.pop %v1271
    %v1273 = vmul.f32 %v1268, %v1272
    %s1274 = smul.u32 5, 4
    %s1275 = smul.addr %s1274, 8
    %s1276 = scalar_lea.vmem [#allocation2], %s1275
    %v1277 = vld [vmem:[%s1276] sm:$0xff]
    %v1278 = vld [vmem:[%s1276 + $0x8] sm:$0xff]
    %v1279 = vld [vmem:[%s1276 + $0x10] sm:$0xff]
    %v1280 = vld [vmem:[%s1276 + $0x18] sm:$0xff]
    %v1281 = vpack.c.bf16 %v1273, %v1273
    %1282 = vmatprep.subr.bf16.mxu0 %v657
    %1283 = vmatpush1.bf16.msra.mxu0 %v656
    %1284 = vmatprep.subr.bf16.mxu0 %v653
    %1285 = vmatpush1.bf16.msra.mxu0 %v652
    %1286 = vmatprep.subr.bf16.mxu0 %v649
    %1287 = vmatpush1.bf16.msra.mxu0 %v648
    %1288 = vmatprep.subr.bf16.mxu0 %v645
    %1289 = vmatpush1.bf16.msra.mxu0 %v644
    %1290 = vmatprep.subr.bf16.mxu0 %v641
    %1291 = vmatpush1.bf16.msra.mxu0 %v640
    %1292 = vmatprep.subr.bf16.mxu0 %v637
    %1293 = vmatpush1.bf16.msra.mxu0 %v636
    %1294 = vmatprep.subr.bf16.mxu0 %v633
    %1295 = vmatpush1.bf16.msra.mxu0 %v632
    %1296 = vmatprep.subr.bf16.mxu0 %v629
    %1297 = vmatpush1.bf16.msra.mxu0 %v628
    %1298 = vmatprep.subr.bf16.mxu0 0
    %1299 = vmatpush2.bf16.msra.mxu0 0
    %1300 = vmatprep.subr.bf16.mxu0 0
    %1301 = vmatpush2.bf16.msra.mxu0 0
    %1302 = vmatprep.subr.bf16.mxu0 0
    %1303 = vmatpush2.bf16.msra.mxu0 0
    %1304 = vmatprep.subr.bf16.mxu0 0
    %1305 = vmatpush2.bf16.msra.mxu0 0
    %1306 = vmatprep.subr.bf16.mxu0 0
    %1307 = vmatpush2.bf16.msra.mxu0 0
    %1308 = vmatprep.subr.bf16.mxu0 0
    %1309 = vmatpush2.bf16.msra.mxu0 0
    %1310 = vmatprep.subr.bf16.mxu0 0
    %1311 = vmatpush2.bf16.msra.mxu0 0
    %1312 = vmatprep.subr.bf16.mxu0 0
    %1313 = vmatpush2.bf16.msra.mxu0 0
    %1314 = vmatprep.mubr.bf16.mxu0 0
    %1315 = vmatmul.mubr.bf16.gmra.mxu0 %v1281
    %v1316 = vpop.f32.mrf.mxu0
    %v1317 = vadd.f32 0.0, %v1316
    %v1318 = vpop.f32.mrf.mxu0
    %v1319 = vadd.f32 0.0, %v1318
    %v1320 = vpop.f32.mrf.mxu0
    %v1321 = vpop.f32.mrf.mxu0
    %1322 = vdwg.mxu0
    %1323 = vmatprep.subr.bf16.mxu0 %v659
    %1324 = vmatpush1.bf16.msra.mxu0 %v658
    %1325 = vmatprep.subr.bf16.mxu0 %v655
    %1326 = vmatpush1.bf16.msra.mxu0 %v654
    %1327 = vmatprep.subr.bf16.mxu0 %v651
    %1328 = vmatpush1.bf16.msra.mxu0 %v650
    %1329 = vmatprep.subr.bf16.mxu0 %v647
    %1330 = vmatpush1.bf16.msra.mxu0 %v646
    %1331 = vmatprep.subr.bf16.mxu0 %v643
    %1332 = vmatpush1.bf16.msra.mxu0 %v642
    %1333 = vmatprep.subr.bf16.mxu0 %v639
    %1334 = vmatpush1.bf16.msra.mxu0 %v638
    %1335 = vmatprep.subr.bf16.mxu0 %v635
    %1336 = vmatpush1.bf16.msra.mxu0 %v634
    %1337 = vmatprep.subr.bf16.mxu0 %v631
    %1338 = vmatpush1.bf16.msra.mxu0 %v630
    %1339 = vmatprep.subr.bf16.mxu0 0
    %1340 = vmatpush2.bf16.msra.mxu0 0
    %1341 = vmatprep.subr.bf16.mxu0 0
    %1342 = vmatpush2.bf16.msra.mxu0 0
    %1343 = vmatprep.subr.bf16.mxu0 0
    %1344 = vmatpush2.bf16.msra.mxu0 0
    %1345 = vmatprep.subr.bf16.mxu0 0
    %1346 = vmatpush2.bf16.msra.mxu0 0
    %1347 = vmatprep.subr.bf16.mxu0 0
    %1348 = vmatpush2.bf16.msra.mxu0 0
    %1349 = vmatprep.subr.bf16.mxu0 0
    %1350 = vmatpush2.bf16.msra.mxu0 0
    %1351 = vmatprep.subr.bf16.mxu0 0
    %1352 = vmatpush2.bf16.msra.mxu0 0
    %1353 = vmatprep.subr.bf16.mxu0 0
    %1354 = vmatpush2.bf16.msra.mxu0 0
    %1355 = vmatprep.mubr.bf16.mxu0 0
    %1356 = vmatmul.mubr.bf16.gmra.mxu0 %v1281
    %v1357 = vpop.f32.mrf.mxu0
    %v1358 = vadd.f32 0.0, %v1357
    %v1359 = vpop.f32.mrf.mxu0
    %v1360 = vadd.f32 0.0, %v1359
    %v1361 = vpop.f32.mrf.mxu0
    %v1362 = vpop.f32.mrf.mxu0
    %1363 = vdwg.mxu0
    %v1364 = vadd.f32 %v1277, %v1317
    %v1365 = vadd.f32 %v1278, %v1319
    %v1366 = vadd.f32 %v1279, %v1358
    %v1367 = vadd.f32 %v1280, %v1360
    %v1368 = vxor.u32 %v1364, 2147483648
    %v1369 = vmul.f32 %v1368, 1.442695
    %v1370 = vpow.pop %v1369
    %v1371 = vadd.f32 %v1370, 1.0
    %v1372 = vrcp.pop %v1371
    %v1373 = vmul.f32 1.0, %v1372
    %v1374 = vxor.u32 %v1365, 2147483648
    %v1375 = vmul.f32 %v1374, 1.442695
    %v1376 = vpow.pop %v1375
    %v1377 = vadd.f32 %v1376, 1.0
    %v1378 = vrcp.pop %v1377
    %v1379 = vmul.f32 1.0, %v1378
    %v1380 = vtanh.pop %v1366
    %v1381 = vxor.u32 %v1367, 2147483648
    %v1382 = vmul.f32 %v1381, 1.442695
    %v1383 = vpow.pop %v1382
    %v1384 = vadd.f32 %v1383, 1.0
    %v1385 = vrcp.pop %v1384
    %v1386 = vmul.f32 1.0, %v1385
    %v1387 = vmul.f32 %v1379, %v1271
    %v1388 = vmul.f32 %v1373, %v1380
    %v1389 = vadd.f32 %v1387, %v1388
    %v1390 = vtanh.pop %v1389
    %v1391 = vmul.f32 %v1386, %v1390
    %s1392 = smul.u32 6, 4
    %s1393 = smul.addr %s1392, 8
    %s1394 = scalar_lea.vmem [#allocation2], %s1393
    %v1395 = vld [vmem:[%s1394] sm:$0xff]
    %v1396 = vld [vmem:[%s1394 + $0x8] sm:$0xff]
    %v1397 = vld [vmem:[%s1394 + $0x10] sm:$0xff]
    %v1398 = vld [vmem:[%s1394 + $0x18] sm:$0xff]
    %v1399 = vpack.c.bf16 %v1391, %v1391
    %1400 = vmatprep.subr.bf16.mxu0 %v657
    %1401 = vmatpush1.bf16.msra.mxu0 %v656
    %1402 = vmatprep.subr.bf16.mxu0 %v653
    %1403 = vmatpush1.bf16.msra.mxu0 %v652
    %1404 = vmatprep.subr.bf16.mxu0 %v649
    %1405 = vmatpush1.bf16.msra.mxu0 %v648
    %1406 = vmatprep.subr.bf16.mxu0 %v645
    %1407 = vmatpush1.bf16.msra.mxu0 %v644
    %1408 = vmatprep.subr.bf16.mxu0 %v641
    %1409 = vmatpush1.bf16.msra.mxu0 %v640
    %1410 = vmatprep.subr.bf16.mxu0 %v637
    %1411 = vmatpush1.bf16.msra.mxu0 %v636
    %1412 = vmatprep.subr.bf16.mxu0 %v633
    %1413 = vmatpush1.bf16.msra.mxu0 %v632
    %1414 = vmatprep.subr.bf16.mxu0 %v629
    %1415 = vmatpush1.bf16.msra.mxu0 %v628
    %1416 = vmatprep.subr.bf16.mxu0 0
    %1417 = vmatpush2.bf16.msra.mxu0 0
    %1418 = vmatprep.subr.bf16.mxu0 0
    %1419 = vmatpush2.bf16.msra.mxu0 0
    %1420 = vmatprep.subr.bf16.mxu0 0
    %1421 = vmatpush2.bf16.msra.mxu0 0
    %1422 = vmatprep.subr.bf16.mxu0 0
    %1423 = vmatpush2.bf16.msra.mxu0 0
    %1424 = vmatprep.subr.bf16.mxu0 0
    %1425 = vmatpush2.bf16.msra.mxu0 0
    %1426 = vmatprep.subr.bf16.mxu0 0
    %1427 = vmatpush2.bf16.msra.mxu0 0
    %1428 = vmatprep.subr.bf16.mxu0 0
    %1429 = vmatpush2.bf16.msra.mxu0 0
    %1430 = vmatprep.subr.bf16.mxu0 0
    %1431 = vmatpush2.bf16.msra.mxu0 0
    %1432 = vmatprep.mubr.bf16.mxu0 0
    %1433 = vmatmul.mubr.bf16.gmra.mxu0 %v1399
    %v1434 = vpop.f32.mrf.mxu0
    %v1435 = vadd.f32 0.0, %v1434
    %v1436 = vpop.f32.mrf.mxu0
    %v1437 = vadd.f32 0.0, %v1436
    %v1438 = vpop.f32.mrf.mxu0
    %v1439 = vpop.f32.mrf.mxu0
    %1440 = vdwg.mxu0
    %1441 = vmatprep.subr.bf16.mxu0 %v659
    %1442 = vmatpush1.bf16.msra.mxu0 %v658
    %1443 = vmatprep.subr.bf16.mxu0 %v655
    %1444 = vmatpush1.bf16.msra.mxu0 %v654
    %1445 = vmatprep.subr.bf16.mxu0 %v651
    %1446 = vmatpush1.bf16.msra.mxu0 %v650
    %1447 = vmatprep.subr.bf16.mxu0 %v647
    %1448 = vmatpush1.bf16.msra.mxu0 %v646
    %1449 = vmatprep.subr.bf16.mxu0 %v643
    %1450 = vmatpush1.bf16.msra.mxu0 %v642
    %1451 = vmatprep.subr.bf16.mxu0 %v639
    %1452 = vmatpush1.bf16.msra.mxu0 %v638
    %1453 = vmatprep.subr.bf16.mxu0 %v635
    %1454 = vmatpush1.bf16.msra.mxu0 %v634
    %1455 = vmatprep.subr.bf16.mxu0 %v631
    %1456 = vmatpush1.bf16.msra.mxu0 %v630
    %1457 = vmatprep.subr.bf16.mxu0 0
    %1458 = vmatpush2.bf16.msra.mxu0 0
    %1459 = vmatprep.subr.bf16.mxu0 0
    %1460 = vmatpush2.bf16.msra.mxu0 0
    %1461 = vmatprep.subr.bf16.mxu0 0
    %1462 = vmatpush2.bf16.msra.mxu0 0
    %1463 = vmatprep.subr.bf16.mxu0 0
    %1464 = vmatpush2.bf16.msra.mxu0 0
    %1465 = vmatprep.subr.bf16.mxu0 0
    %1466 = vmatpush2.bf16.msra.mxu0 0
    %1467 = vmatprep.subr.bf16.mxu0 0
    %1468 = vmatpush2.bf16.msra.mxu0 0
    %1469 = vmatprep.subr.bf16.mxu0 0
    %1470 = vmatpush2.bf16.msra.mxu0 0
    %1471 = vmatprep.subr.bf16.mxu0 0
    %1472 = vmatpush2.bf16.msra.mxu0 0
    %1473 = vmatprep.mubr.bf16.mxu0 0
    %1474 = vmatmul.mubr.bf16.gmra.mxu0 %v1399
    %v1475 = vpop.f32.mrf.mxu0
    %v1476 = vadd.f32 0.0, %v1475
    %v1477 = vpop.f32.mrf.mxu0
    %v1478 = vadd.f32 0.0, %v1477
    %v1479 = vpop.f32.mrf.mxu0
    %v1480 = vpop.f32.mrf.mxu0
    %1481 = vdwg.mxu0
    %v1482 = vadd.f32 %v1395, %v1435
    %v1483 = vadd.f32 %v1396, %v1437
    %v1484 = vadd.f32 %v1397, %v1476
    %v1485 = vadd.f32 %v1398, %v1478
    %v1486 = vxor.u32 %v1482, 2147483648
    %v1487 = vmul.f32 %v1486, 1.442695
    %v1488 = vpow.pop %v1487
    %v1489 = vadd.f32 %v1488, 1.0
    %v1490 = vrcp.pop %v1489
    %v1491 = vmul.f32 1.0, %v1490
    %v1492 = vxor.u32 %v1483, 2147483648
    %v1493 = vmul.f32 %v1492, 1.442695
    %v1494 = vpow.pop %v1493
    %v1495 = vadd.f32 %v1494, 1.0
    %v1496 = vrcp.pop %v1495
    %v1497 = vmul.f32 1.0, %v1496
    %v1498 = vtanh.pop %v1484
    %v1499 = vxor.u32 %v1485, 2147483648
    %v1500 = vmul.f32 %v1499, 1.442695
    %v1501 = vpow.pop %v1500
    %v1502 = vadd.f32 %v1501, 1.0
    %v1503 = vrcp.pop %v1502
    %v1504 = vmul.f32 1.0, %v1503
    %v1505 = vmul.f32 %v1497, %v1389
    %v1506 = vmul.f32 %v1491, %v1498
    %v1507 = vadd.f32 %v1505, %v1506
    %v1508 = vtanh.pop %v1507
    %v1509 = vmul.f32 %v1504, %v1508
    %s1510 = smul.u32 7, 4
    %s1511 = smul.addr %s1510, 8
    %s1512 = scalar_lea.vmem [#allocation2], %s1511
    %v1513 = vld [vmem:[%s1512] sm:$0xff]
    %v1514 = vld [vmem:[%s1512 + $0x8] sm:$0xff]
    %v1515 = vld [vmem:[%s1512 + $0x10] sm:$0xff]
    %v1516 = vld [vmem:[%s1512 + $0x18] sm:$0xff]
    %v1517 = vpack.c.bf16 %v1509, %v1509
    %1518 = vmatprep.subr.bf16.mxu0 %v657
    %1519 = vmatpush1.bf16.msra.mxu0 %v656
    %1520 = vmatprep.subr.bf16.mxu0 %v653
    %1521 = vmatpush1.bf16.msra.mxu0 %v652
    %1522 = vmatprep.subr.bf16.mxu0 %v649
    %1523 = vmatpush1.bf16.msra.mxu0 %v648
    %1524 = vmatprep.subr.bf16.mxu0 %v645
    %1525 = vmatpush1.bf16.msra.mxu0 %v644
    %1526 = vmatprep.subr.bf16.mxu0 %v641
    %1527 = vmatpush1.bf16.msra.mxu0 %v640
    %1528 = vmatprep.subr.bf16.mxu0 %v637
    %1529 = vmatpush1.bf16.msra.mxu0 %v636
    %1530 = vmatprep.subr.bf16.mxu0 %v633
    %1531 = vmatpush1.bf16.msra.mxu0 %v632
    %1532 = vmatprep.subr.bf16.mxu0 %v629
    %1533 = vmatpush1.bf16.msra.mxu0 %v628
    %1534 = vmatprep.subr.bf16.mxu0 0
    %1535 = vmatpush2.bf16.msra.mxu0 0
    %1536 = vmatprep.subr.bf16.mxu0 0
    %1537 = vmatpush2.bf16.msra.mxu0 0
    %1538 = vmatprep.subr.bf16.mxu0 0
    %1539 = vmatpush2.bf16.msra.mxu0 0
    %1540 = vmatprep.subr.bf16.mxu0 0
    %1541 = vmatpush2.bf16.msra.mxu0 0
    %1542 = vmatprep.subr.bf16.mxu0 0
    %1543 = vmatpush2.bf16.msra.mxu0 0
    %1544 = vmatprep.subr.bf16.mxu0 0
    %1545 = vmatpush2.bf16.msra.mxu0 0
    %1546 = vmatprep.subr.bf16.mxu0 0
    %1547 = vmatpush2.bf16.msra.mxu0 0
    %1548 = vmatprep.subr.bf16.mxu0 0
    %1549 = vmatpush2.bf16.msra.mxu0 0
    %1550 = vmatprep.mubr.bf16.mxu0 0
    %1551 = vmatmul.mubr.bf16.gmra.mxu0 %v1517
    %v1552 = vpop.f32.mrf.mxu0
    %v1553 = vadd.f32 0.0, %v1552
    %v1554 = vpop.f32.mrf.mxu0
    %v1555 = vadd.f32 0.0, %v1554
    %v1556 = vpop.f32.mrf.mxu0
    %v1557 = vpop.f32.mrf.mxu0
    %1558 = vdwg.mxu0
    %1559 = vmatprep.subr.bf16.mxu0 %v659
    %1560 = vmatpush1.bf16.msra.mxu0 %v658
    %1561 = vmatprep.subr.bf16.mxu0 %v655
    %1562 = vmatpush1.bf16.msra.mxu0 %v654
    %1563 = vmatprep.subr.bf16.mxu0 %v651
    %1564 = vmatpush1.bf16.msra.mxu0 %v650
    %1565 = vmatprep.subr.bf16.mxu0 %v647
    %1566 = vmatpush1.bf16.msra.mxu0 %v646
    %1567 = vmatprep.subr.bf16.mxu0 %v643
    %1568 = vmatpush1.bf16.msra.mxu0 %v642
    %1569 = vmatprep.subr.bf16.mxu0 %v639
    %1570 = vmatpush1.bf16.msra.mxu0 %v638
    %1571 = vmatprep.subr.bf16.mxu0 %v635
    %1572 = vmatpush1.bf16.msra.mxu0 %v634
    %1573 = vmatprep.subr.bf16.mxu0 %v631
    %1574 = vmatpush1.bf16.msra.mxu0 %v630
    %1575 = vmatprep.subr.bf16.mxu0 0
    %1576 = vmatpush2.bf16.msra.mxu0 0
    %1577 = vmatprep.subr.bf16.mxu0 0
    %1578 = vmatpush2.bf16.msra.mxu0 0
    %1579 = vmatprep.subr.bf16.mxu0 0
    %1580 = vmatpush2.bf16.msra.mxu0 0
    %1581 = vmatprep.subr.bf16.mxu0 0
    %1582 = vmatpush2.bf16.msra.mxu0 0
    %1583 = vmatprep.subr.bf16.mxu0 0
    %1584 = vmatpush2.bf16.msra.mxu0 0
    %1585 = vmatprep.subr.bf16.mxu0 0
    %1586 = vmatpush2.bf16.msra.mxu0 0
    %1587 = vmatprep.subr.bf16.mxu0 0
    %1588 = vmatpush2.bf16.msra.mxu0 0
    %1589 = vmatprep.subr.bf16.mxu0 0
    %1590 = vmatpush2.bf16.msra.mxu0 0
    %1591 = vmatprep.mubr.bf16.mxu0 0
    %1592 = vmatmul.mubr.bf16.gmra.mxu0 %v1517
    %v1593 = vpop.f32.mrf.mxu0
    %v1594 = vadd.f32 0.0, %v1593
    %v1595 = vpop.f32.mrf.mxu0
    %v1596 = vadd.f32 0.0, %v1595
    %v1597 = vpop.f32.mrf.mxu0
    %v1598 = vpop.f32.mrf.mxu0
    %1599 = vdwg.mxu0
    %v1600 = vadd.f32 %v1513, %v1553
    %v1601 = vadd.f32 %v1514, %v1555
    %v1602 = vadd.f32 %v1515, %v1594
    %v1603 = vadd.f32 %v1516, %v1596
    %v1604 = vxor.u32 %v1600, 2147483648
    %v1605 = vmul.f32 %v1604, 1.442695
    %v1606 = vpow.pop %v1605
    %v1607 = vadd.f32 %v1606, 1.0
    %v1608 = vrcp.pop %v1607
    %v1609 = vmul.f32 1.0, %v1608
    %v1610 = vxor.u32 %v1601, 2147483648
    %v1611 = vmul.f32 %v1610, 1.442695
    %v1612 = vpow.pop %v1611
    %v1613 = vadd.f32 %v1612, 1.0
    %v1614 = vrcp.pop %v1613
    %v1615 = vmul.f32 1.0, %v1614
    %v1616 = vtanh.pop %v1602
    %v1617 = vxor.u32 %v1603, 2147483648
    %v1618 = vmul.f32 %v1617, 1.442695
    %v1619 = vpow.pop %v1618
    %v1620 = vadd.f32 %v1619, 1.0
    %v1621 = vrcp.pop %v1620
    %v1622 = vmul.f32 1.0, %v1621
    %v1623 = vmul.f32 %v1615, %v1507
    %v1624 = vmul.f32 %v1609, %v1616
    %v1625 = vadd.f32 %v1623, %v1624
    %v1626 = vtanh.pop %v1625
    %v1627 = vmul.f32 %v1622, %v1626
    %1628 = vst [vmem:[#allocation3] sm:$0xff] %v1627
    %1629 = vst [vmem:[#allocation4] sm:$0xff] %v1625
    // Predicated region
    $region34: #{tpu_custom_call.1} parent=1 // pred_check
      %p1630 = pneg %p484
    $region35: #{tpu_custom_call.1} parent=1 // pred_check_branch
      %1632 = sbr.rel (%p1630) target = $region37
    $region36: #{tpu_custom_call.1} parent=1 // pred_region
      %1633 = vst [vmem:[#allocation11] sm:$0xff] %v1627
    $region37: #{tpu_custom_call.1} parent=1 // pred_fallthru
      _
    // Predicated region
    $region38: #{tpu_custom_call.1} parent=1 // pred_check
      _
    $region39: #{tpu_custom_call.1} parent=1 // pred_check_branch
      %1635 = sbr.rel (0) target = $region41
    $region40: #{tpu_custom_call.1} parent=1 // pred_region
      %s1637 = ssub.s32 128, 128
      %1638 = vsyncadd [#allocation7], %s1637
      %s1640 = sshll.u32 [#allocation11], 4
      %s1641 = int_to_ptr.vmem [resolvable:$true] %s1640
      %1643 = dma.vmem_to_hbm [thread:$0]  %s1641, 128, %s4, [#allocation7]
    $region41: #{tpu_custom_call.1} parent=1 // pred_fallthru
      _
    // Predicated region
    $region42: #{tpu_custom_call.1} parent=1 // pred_check
      _
    $region43: #{tpu_custom_call.1} parent=1 // pred_check_branch
      %1645 = sbr.rel (0) target = $region45
    $region44: #{tpu_custom_call.1} parent=1 // pred_region
      %1646 = dma.done [#allocation7], 128
    $region45: #{tpu_custom_call.1} parent=1 // pred_fallthru
      _
    %1647 = vsyncpa [#allocation6], 1
    %1648 = vsyncpa [#allocation9], 1
    %1649 = vsyncpa [#allocation7], 1

</llo_original>
